<compile_context>
chip_gen: v6e
topology: v6e:2x2x1
jax: 0.10.0
libtpu: 0.0.40
codegen_flags: <defaults>
</compile_context>

<pallas_src>
import jax
import jax.numpy as jnp
from jax import lax
from jax.experimental import pallas as pl
from jax.experimental.pallas import tpu as pltpu


def bottleneck_kernel(x_ref, s1_ref, b1_ref, w1_ref, s2_ref, b2_ref, w2_ref,
                      o_ref, catx_ref):
    # x_ref : (1, H, W, Cin)          f32   resident full image for this batch n
    # s1/b1 : (1, Cin)                f32   folded BN1 scale/shift
    # w1    : (Cin, Cmid)             bf16  1x1 conv weight
    # s2/b2 : (1, Cmid)               f32   folded BN2 scale/shift
    # w2    : (3, 3*Cmid, Cout)       bf16  3x3 conv weight, [dy, dx*Cmid+c, o]
    # o_ref : (1, HT, W, Cout+Cin)    f32   row tile of concat([conv_out, x])
    # catx  : (HT+2, W, 3*Cmid)       bf16  im2col-over-dx scratch (with halo rows)
    _, H, W, Cin = x_ref.shape
    Cmid = w1_ref.shape[1]
    Cout = w2_ref.shape[2]
    HT = o_ref.shape[1]

    t = pl.program_id(1)
    nt = pl.num_programs(1)
    r0 = pl.multiple_of(t * HT, HT)          # first output row of this tile

    s1 = s1_ref[...]
    b1 = b1_ref[...]
    s2 = s2_ref[...]
    b2 = b2_ref[...]
    w1 = w1_ref[...]

    def mid_rows(xrows, nrows):
        # bn1 + relu -> 1x1 conv (MXU, f32 accum) -> bn2 + relu, as bf16.
        a = jnp.maximum(xrows.reshape(nrows * W, Cin) * s1 + b1, 0.0)
        m = jnp.dot(a.astype(jnp.bfloat16), w1,
                    preferred_element_type=jnp.float32)
        m = jnp.maximum(m * s2 + b2, 0.0)
        return m.astype(jnp.bfloat16).reshape(nrows, W, Cmid)

    def store_shifted(i0, nrows, m):
        # catx[i, w, dx*Cmid + c] = midpad[r0 - 1 + i, w + dx, c]
        catx_ref[i0:i0 + nrows, 1:W, 0:Cmid] = m[:, 0:W - 1, :]             # dx = 0
        catx_ref[i0:i0 + nrows, :, Cmid:2 * Cmid] = m                       # dx = 1
        catx_ref[i0:i0 + nrows, 0:W - 1, 2 * Cmid:3 * Cmid] = m[:, 1:W, :]  # dx = 2

    # ---- halo-only zeroing (interior of catx is fully overwritten below) ----
    zero_col = jnp.zeros((HT + 2, 1, Cmid), jnp.bfloat16)
    catx_ref[:, 0:1, 0:Cmid] = zero_col                         # dx=0, left image edge
    catx_ref[:, W - 1:W, 2 * Cmid:3 * Cmid] = zero_col          # dx=2, right image edge

    # ---- center rows of the intermediate (the HT output rows) ----
    x_tile = x_ref[0, pl.ds(r0, HT), :, :]                      # (HT, W, Cin) f32
    store_shifted(1, HT, mid_rows(x_tile, HT))

    # ---- top halo row: mid row r0-1 (zero at the top image edge) ----
    @pl.when(t == 0)
    def _():
        catx_ref[0:1, :, :] = jnp.zeros((1, W, 3 * Cmid), jnp.bfloat16)

    @pl.when(t > 0)
    def _():
        store_shifted(0, 1, mid_rows(x_ref[0, pl.ds(r0 - 1, 1), :, :], 1))

    # ---- bottom halo row: mid row r0+HT (zero at the bottom image edge) ----
    @pl.when(t == nt - 1)
    def _():
        catx_ref[HT + 1:HT + 2, :, :] = jnp.zeros((1, W, 3 * Cmid), jnp.bfloat16)

    @pl.when(t < nt - 1)
    def _():
        store_shifted(HT + 1, 1, mid_rows(x_ref[0, pl.ds(r0 + HT, 1), :, :], 1))

    # ---- 3x3 conv = 3 matmuls with K = 3*Cmid (one per kernel row dy) ----
    acc = jnp.dot(catx_ref[0:HT].reshape(HT * W, 3 * Cmid), w2_ref[0],
                  preferred_element_type=jnp.float32)
    acc += jnp.dot(catx_ref[1:HT + 1].reshape(HT * W, 3 * Cmid), w2_ref[1],
                   preferred_element_type=jnp.float32)
    acc += jnp.dot(catx_ref[2:HT + 2].reshape(HT * W, 3 * Cmid), w2_ref[2],
                   preferred_element_type=jnp.float32)

    # ---- fused torch.cat([out, x], channel): single lane-dense store ----
    out_tile = jnp.concatenate(
        [acc.reshape(HT, W, Cout), x_tile], axis=-1).astype(o_ref.dtype)
    o_ref[0] = out_tile


def _pick_vmem_limit(default=32 * 1024 * 1024):
    """~3/4 of physical VMEM, capped at 96 MiB (≈48 MiB on v7x, 96 MiB on v5e/v6e)."""
    try:
        info = pltpu.get_tpu_info()
        cap = getattr(info, "vmem_capacity_bytes", None)
        if cap:
            return int(min(cap * 3 // 4, 96 * 1024 * 1024))
    except Exception:
        pass
    return default


def _pick_row_tile(h, requested):
    rt = min(requested, h)
    if h % rt == 0 and (rt % 8 == 0 or rt == h):
        return rt
    for cand in range(min(requested, h), 7, -1):
        if h % cand == 0 and cand % 8 == 0:
            return cand
    return h


def bottleneck_forward_nhwc(x_nhwc, params, *, row_tile=8):
    """Core entry point: NHWC in, NHWC out (no layout transposes)."""
    s1, b1, w1, s2, b2, w2 = params     # s/b: (1,C) folded BN; w1 (Cin,Cmid); w2 HWIO
    N, H, W, Cin = x_nhwc.shape
    Cmid = w1.shape[1]
    Cout = w2.shape[3]
    rt = _pick_row_tile(H, row_tile)
    nt = H // rt

    w1_b = w1.astype(jnp.bfloat16)                                  # (Cin, Cmid)
    w2_b = w2.reshape(3, 3 * Cmid, Cout).astype(jnp.bfloat16)       # [dy, dx*Cmid+c, o]

    return pl.pallas_call(
        bottleneck_kernel,
        out_shape=jax.ShapeDtypeStruct((N, H, W, Cout + Cin), jnp.float32),
        grid=(N, nt),
        in_specs=[
            pl.BlockSpec((1, H, W, Cin), lambda n, t: (n, 0, 0, 0)),   # resident per n
            pl.BlockSpec((1, Cin), lambda n, t: (0, 0)),
            pl.BlockSpec((1, Cin), lambda n, t: (0, 0)),
            pl.BlockSpec((Cin, Cmid), lambda n, t: (0, 0)),
            pl.BlockSpec((1, Cmid), lambda n, t: (0, 0)),
            pl.BlockSpec((1, Cmid), lambda n, t: (0, 0)),
            pl.BlockSpec((3, 3 * Cmid, Cout), lambda n, t: (0, 0, 0)),
        ],
        out_specs=pl.BlockSpec((1, rt, W, Cout + Cin),
                               lambda n, t: (n, t, 0, 0)),
        scratch_shapes=[pltpu.VMEM((rt + 2, W, 3 * Cmid), jnp.bfloat16)],
        compiler_params=pltpu.CompilerParams(
            dimension_semantics=("parallel", "parallel"),
            vmem_limit_bytes=_pick_vmem_limit(),
        ),
    )(x_nhwc, s1, b1, w1_b, s2, b2, w2_b)


@jax.jit
def bottleneck_forward_nchw(x_nchw, params):
    """PyTorch-layout wrapper (NCHW in/out). In an NHWC model these transposes
    disappear; they only exist for parity with the torch module."""
    x = jnp.transpose(x_nchw, (0, 2, 3, 1)).astype(jnp.float32)
    y = bottleneck_forward_nhwc(x, params)
    return jnp.transpose(y, (0, 3, 1, 2))


def reference_forward_nchw(x_nchw, params):
    """Independent f32 reference via lax.conv (eval-mode BN folded)."""
    s1, b1, w1, s2, b2, w2 = params
    x = jnp.transpose(x_nchw, (0, 2, 3, 1)).astype(jnp.float32)
    Cin, Cmid = w1.shape
    a = jnp.maximum(x * s1.reshape(1, 1, 1, -1) + b1.reshape(1, 1, 1, -1), 0.0)
    mid = lax.conv_general_dilated(
        a, w1.reshape(1, 1, Cin, Cmid), (1, 1), "VALID",
        dimension_numbers=("NHWC", "HWIO", "NHWC"))
    a2 = jnp.maximum(mid * s2.reshape(1, 1, 1, -1) + b2.reshape(1, 1, 1, -1), 0.0)
    out = lax.conv_general_dilated(
        a2, w2, (1, 1), "SAME", dimension_numbers=("NHWC", "HWIO", "NHWC"))
    y = jnp.concatenate([out, x], axis=-1)
    return jnp.transpose(y, (0, 3, 1, 2))


def make_params(key, in_planes, growth_rate, eps=1e-5):
    cmid = 4 * growth_rate
    ks = jax.random.split(key, 10)
    # bn1 (eval mode): gamma, beta, running_mean, running_var
    g1 = 1.0 + 0.1 * jax.random.normal(ks[0], (in_planes,), jnp.float32)
    be1 = 0.1 * jax.random.normal(ks[1], (in_planes,), jnp.float32)
    m1 = 0.1 * jax.random.normal(ks[2], (in_planes,), jnp.float32)
    v1 = jnp.abs(jax.random.normal(ks[3], (in_planes,), jnp.float32)) + 0.5
    # bn2
    g2 = 1.0 + 0.1 * jax.random.normal(ks[4], (cmid,), jnp.float32)
    be2 = 0.1 * jax.random.normal(ks[5], (cmid,), jnp.float32)
    m2 = 0.1 * jax.random.normal(ks[6], (cmid,), jnp.float32)
    v2 = jnp.abs(jax.random.normal(ks[7], (cmid,), jnp.float32)) + 0.5
    # conv weights: torch shapes (Cout, Cin, kh, kw) -> our layouts
    w1_t = 0.1 * jax.random.normal(ks[8], (cmid, in_planes, 1, 1), jnp.float32)
    w2_t = 0.1 * jax.random.normal(ks[9], (growth_rate, cmid, 3, 3), jnp.float32)
    w1 = jnp.transpose(w1_t[:, :, 0, 0], (1, 0))            # (Cin, Cmid)
    w2 = jnp.transpose(w2_t, (2, 3, 1, 0))                  # (3, 3, Cmid, Cout) HWIO
    # fold BN into per-channel scale/shift (eval mode)
    s1 = g1 / jnp.sqrt(v1 + eps)
    b1 = be1 - m1 * s1
    s2 = g2 / jnp.sqrt(v2 + eps)
    b2 = be2 - m2 * s2
    return (s1.reshape(1, -1), b1.reshape(1, -1), w1,
            s2.reshape(1, -1), b2.reshape(1, -1), w2)


if __name__ == "__main__":
    key = jax.random.PRNGKey(0)
    kx, kp = jax.random.split(key)

    # Small DenseNet-like block: Cmid = 4*growth = 128 keeps the im2col scratch
    # and the conv contractions 128-lane aligned; H=W=16 with row_tile=8 gives
    # a (N=2, 2) grid (4 pipeline steps, both v7x cores busy).
    N, in_planes, growth_rate, H, W = 2, 64, 32, 16, 16

    x = jax.random.normal(kx, (N, in_planes, H, W), jnp.float32)  # NCHW like PyTorch
    params = make_params(kp, in_planes, growth_rate)

    y = jax.block_until_ready(bottleneck_forward_nchw(x, params))
    y_ref = reference_forward_nchw(x, params)

    assert y.shape == (N, growth_rate + in_planes, H, W), y.shape
    # Passthrough half of the concat must be bit-exact (stored in f32).
    assert jnp.array_equal(y[:, growth_rate:], x)
    # Conv path uses bf16 MXU inputs with f32 accumulation -> bf16-level tolerance.
    assert jnp.allclose(y, y_ref, atol=1e-1, rtol=2e-2), \
        float(jnp.max(jnp.abs(y - y_ref)))

    print("KERNEL_OK")
</pallas_src>

<mosaic_0001>
module attributes {stable_mosaic.version = 11 : i64} {
  func.func @bottleneck_kernel(%arg0: i32, %arg1: i32, %arg2: memref<1x16x16x64xf32, #tpu.memory_space<vmem>>, %arg3: memref<1x64xf32, #tpu.memory_space<vmem>>, %arg4: memref<1x64xf32, #tpu.memory_space<vmem>>, %arg5: memref<64x128xbf16, #tpu.memory_space<vmem>>, %arg6: memref<1x128xf32, #tpu.memory_space<vmem>>, %arg7: memref<1x128xf32, #tpu.memory_space<vmem>>, %arg8: memref<3x384x32xbf16, #tpu.memory_space<vmem>>, %arg9: memref<1x8x16x96xf32, #tpu.memory_space<vmem>>, %arg10: memref<10x16x384xbf16, #tpu.memory_space<vmem>>) attributes {dimension_semantics = [#tpu.dimension_semantics<parallel>, #tpu.dimension_semantics<parallel>], iteration_bounds = array<i64: 2, 2>, scalar_prefetch = 0 : i64, scratch_operands = 1 : i64, tpu.core_type = #tpu.core_type<tc>, window_params = [{transform_indices = @transform_0, window_bounds = array<i64: 1, 16, 16, 64>}, {pipeline_mode = #tpu.pipeline_mode<synchronous>, transform_indices = @transform_1, window_bounds = array<i64: 1, 64>}, {pipeline_mode = #tpu.pipeline_mode<synchronous>, transform_indices = @transform_2, window_bounds = array<i64: 1, 64>}, {pipeline_mode = #tpu.pipeline_mode<synchronous>, transform_indices = @transform_3, window_bounds = array<i64: 64, 128>}, {pipeline_mode = #tpu.pipeline_mode<synchronous>, transform_indices = @transform_4, window_bounds = array<i64: 1, 128>}, {pipeline_mode = #tpu.pipeline_mode<synchronous>, transform_indices = @transform_5, window_bounds = array<i64: 1, 128>}, {pipeline_mode = #tpu.pipeline_mode<synchronous>, transform_indices = @transform_6, window_bounds = array<i64: 3, 384, 32>}, {transform_indices = @transform_7, window_bounds = array<i64: 1, 8, 16, 96>}]} {
    %c8_i32 = arith.constant 8 : i32
    %0 = arith.muli %arg1, %c8_i32 : i32
    %1 = tpu.assume_multiple %0, 8 : i32
    %c0 = arith.constant 0 : index
    %c0_0 = arith.constant 0 : index
    %2 = vector.load %arg3[%c0, %c0_0] : memref<1x64xf32, #tpu.memory_space<vmem>>, vector<1x64xf32>
    %c0_1 = arith.constant 0 : index
    %c0_2 = arith.constant 0 : index
    %3 = vector.load %arg4[%c0_1, %c0_2] : memref<1x64xf32, #tpu.memory_space<vmem>>, vector<1x64xf32>
    %c0_3 = arith.constant 0 : index
    %c0_4 = arith.constant 0 : index
    %4 = vector.load %arg6[%c0_3, %c0_4] : memref<1x128xf32, #tpu.memory_space<vmem>>, vector<1x128xf32>
    %c0_5 = arith.constant 0 : index
    %c0_6 = arith.constant 0 : index
    %5 = vector.load %arg7[%c0_5, %c0_6] : memref<1x128xf32, #tpu.memory_space<vmem>>, vector<1x128xf32>
    %c0_7 = arith.constant 0 : index
    %c0_8 = arith.constant 0 : index
    %6 = vector.load %arg5[%c0_7, %c0_8] : memref<64x128xbf16, #tpu.memory_space<vmem>>, vector<64x128xbf16>
    %cst = arith.constant 0.000000e+00 : bf16
    %7 = vector.broadcast %cst : bf16 to vector<10x1x128xbf16>
    %c0_9 = arith.constant 0 : index
    %c0_10 = arith.constant 0 : index
    %c0_11 = arith.constant 0 : index
    %8 = vector.load %arg10[%c0_9, %c0_10, %c0_11] : memref<10x16x384xbf16, #tpu.memory_space<vmem>>, vector<10x1x128xbf16>
    tpu.vector_store %arg10[%c0_9, %c0_10, %c0_11], %7 {strides = array<i32>} : memref<10x16x384xbf16, #tpu.memory_space<vmem>>, vector<10x1x128xbf16>,
    %c0_12 = arith.constant 0 : index
    %c15 = arith.constant 15 : index
    %c256 = arith.constant 256 : index
    %9 = vector.load %arg10[%c0_12, %c15, %c256] : memref<10x16x384xbf16, #tpu.memory_space<vmem>>, vector<10x1x128xbf16>
    tpu.vector_store %arg10[%c0_12, %c15, %c256], %7 {strides = array<i32>} : memref<10x16x384xbf16, #tpu.memory_space<vmem>>, vector<10x1x128xbf16>,
    %c0_13 = arith.constant 0 : index
    %10 = arith.index_cast %1 : i32 to index
    %c0_14 = arith.constant 0 : index
    %c0_15 = arith.constant 0 : index
    %11 = vector.load %arg2[%c0_13, %10, %c0_14, %c0_15] : memref<1x16x16x64xf32, #tpu.memory_space<vmem>>, vector<1x8x16x64xf32>
    %12 = vector.shape_cast %11 : vector<1x8x16x64xf32> to vector<8x16x64xf32>
    %13 = vector.shape_cast %12 : vector<8x16x64xf32> to vector<128x64xf32>
    %14 = vector.broadcast %2 : vector<1x64xf32> to vector<128x64xf32>
    %15 = arith.mulf %13, %14 : vector<128x64xf32>
    %16 = vector.broadcast %3 : vector<1x64xf32> to vector<128x64xf32>
    %17 = arith.addf %15, %16 : vector<128x64xf32>
    %cst_16 = arith.constant 0.000000e+00 : f32
    %18 = vector.broadcast %cst_16 : f32 to vector<128x64xf32>
    %19 = arith.maximumf %17, %18 : vector<128x64xf32>
    %20 = arith.truncf %19 : vector<128x64xf32> to vector<128x64xbf16>
    %cst_17 = arith.constant dense<0.000000e+00> : vector<128x128xf32>
    %21 = tpu.matmul %20, %6, %cst_17 {dimension_numbers = #tpu.dot_dimension_numbers<[1], [0], [0], [1], [0, 0, 1, 1], [], []>} : vector<128x64xbf16>, vector<64x128xbf16>, vector<128x128xf32> -> vector<128x128xf32>
    %22 = vector.broadcast %4 : vector<1x128xf32> to vector<128x128xf32>
    %23 = arith.mulf %21, %22 : vector<128x128xf32>
    %24 = vector.broadcast %5 : vector<1x128xf32> to vector<128x128xf32>
    %25 = arith.addf %23, %24 : vector<128x128xf32>
    %cst_18 = arith.constant 0.000000e+00 : f32
    %26 = vector.broadcast %cst_18 : f32 to vector<128x128xf32>
    %27 = arith.maximumf %25, %26 : vector<128x128xf32>
    %28 = arith.truncf %27 : vector<128x128xf32> to vector<128x128xbf16>
    %29 = vector.shape_cast %28 : vector<128x128xbf16> to vector<8x16x128xbf16>
    %30 = vector.extract_strided_slice %29 {offsets = [0, 0, 0], sizes = [8, 15, 128], strides = [1, 1, 1]} : vector<8x16x128xbf16> to vector<8x15x128xbf16>
    %c1 = arith.constant 1 : index
    %c1_19 = arith.constant 1 : index
    %c0_20 = arith.constant 0 : index
    %31 = vector.load %arg10[%c1, %c1_19, %c0_20] : memref<10x16x384xbf16, #tpu.memory_space<vmem>>, vector<8x15x128xbf16>
    tpu.vector_store %arg10[%c1, %c1_19, %c0_20], %30 {strides = array<i32>} : memref<10x16x384xbf16, #tpu.memory_space<vmem>>, vector<8x15x128xbf16>,
    %c1_21 = arith.constant 1 : index
    %c0_22 = arith.constant 0 : index
    %c128 = arith.constant 128 : index
    %32 = vector.load %arg10[%c1_21, %c0_22, %c128] : memref<10x16x384xbf16, #tpu.memory_space<vmem>>, vector<8x16x128xbf16>
    tpu.vector_store %arg10[%c1_21, %c0_22, %c128], %29 {strides = array<i32>} : memref<10x16x384xbf16, #tpu.memory_space<vmem>>, vector<8x16x128xbf16>,
    %33 = vector.extract_strided_slice %29 {offsets = [0, 1, 0], sizes = [8, 15, 128], strides = [1, 1, 1]} : vector<8x16x128xbf16> to vector<8x15x128xbf16>
    %c1_23 = arith.constant 1 : index
    %c0_24 = arith.constant 0 : index
    %c256_25 = arith.constant 256 : index
    %34 = vector.load %arg10[%c1_23, %c0_24, %c256_25] : memref<10x16x384xbf16, #tpu.memory_space<vmem>>, vector<8x15x128xbf16>
    tpu.vector_store %arg10[%c1_23, %c0_24, %c256_25], %33 {strides = array<i32>} : memref<10x16x384xbf16, #tpu.memory_space<vmem>>, vector<8x15x128xbf16>,
    %c0_i32 = arith.constant 0 : i32
    %35 = arith.cmpi eq, %arg1, %c0_i32 : i32
    %36 = arith.extui %35 : i1 to i32
    %c0_i32_26 = arith.constant 0 : i32
    %37 = arith.cmpi ne, %36, %c0_i32_26 : i32
    scf.if %37 {
      %cst_56 = arith.constant 0.000000e+00 : bf16
      %69 = vector.broadcast %cst_56 : bf16 to vector<1x16x384xbf16>
      %c0_57 = arith.constant 0 : index
      %c0_58 = arith.constant 0 : index
      %c0_59 = arith.constant 0 : index
      %70 = vector.load %arg10[%c0_57, %c0_58, %c0_59] : memref<10x16x384xbf16, #tpu.memory_space<vmem>>, vector<1x16x384xbf16>
      tpu.vector_store %arg10[%c0_57, %c0_58, %c0_59], %69 {strides = array<i32>} : memref<10x16x384xbf16, #tpu.memory_space<vmem>>, vector<1x16x384xbf16>,
    } else {
    }
    %c0_i32_27 = arith.constant 0 : i32
    %38 = arith.cmpi sgt, %arg1, %c0_i32_27 : i32
    %39 = arith.extui %38 : i1 to i32
    %c0_i32_28 = arith.constant 0 : i32
    %40 = arith.cmpi ne, %39, %c0_i32_28 : i32
    scf.if %40 {
      %c1_i32_56 = arith.constant 1 : i32
      %69 = arith.subi %1, %c1_i32_56 : i32
      %c0_57 = arith.constant 0 : index
      %70 = arith.index_cast %69 : i32 to index
      %c0_58 = arith.constant 0 : index
      %c0_59 = arith.constant 0 : index
      %71 = vector.load %arg2[%c0_57, %70, %c0_58, %c0_59] : memref<1x16x16x64xf32, #tpu.memory_space<vmem>>, vector<1x1x16x64xf32>
      %72 = vector.shape_cast %71 : vector<1x1x16x64xf32> to vector<1x16x64xf32>
      %73 = vector.shape_cast %72 : vector<1x16x64xf32> to vector<16x64xf32>
      %74 = vector.broadcast %2 : vector<1x64xf32> to vector<16x64xf32>
      %75 = arith.mulf %73, %74 : vector<16x64xf32>
      %76 = vector.broadcast %3 : vector<1x64xf32> to vector<16x64xf32>
      %77 = arith.addf %75, %76 : vector<16x64xf32>
      %cst_60 = arith.constant 0.000000e+00 : f32
      %78 = vector.broadcast %cst_60 : f32 to vector<16x64xf32>
      %79 = arith.maximumf %77, %78 : vector<16x64xf32>
      %80 = arith.truncf %79 : vector<16x64xf32> to vector<16x64xbf16>
      %cst_61 = arith.constant dense<0.000000e+00> : vector<16x128xf32>
      %81 = tpu.matmul %80, %6, %cst_61 {dimension_numbers = #tpu.dot_dimension_numbers<[1], [0], [0], [1], [0, 0, 1, 1], [], []>} : vector<16x64xbf16>, vector<64x128xbf16>, vector<16x128xf32> -> vector<16x128xf32>
      %82 = vector.broadcast %4 : vector<1x128xf32> to vector<16x128xf32>
      %83 = arith.mulf %81, %82 : vector<16x128xf32>
      %84 = vector.broadcast %5 : vector<1x128xf32> to vector<16x128xf32>
      %85 = arith.addf %83, %84 : vector<16x128xf32>
      %cst_62 = arith.constant 0.000000e+00 : f32
      %86 = vector.broadcast %cst_62 : f32 to vector<16x128xf32>
      %87 = arith.maximumf %85, %86 : vector<16x128xf32>
      %88 = arith.truncf %87 : vector<16x128xf32> to vector<16x128xbf16>
      %89 = vector.shape_cast %88 : vector<16x128xbf16> to vector<1x16x128xbf16>
      %90 = vector.extract_strided_slice %89 {offsets = [0, 0, 0], sizes = [1, 15, 128], strides = [1, 1, 1]} : vector<1x16x128xbf16> to vector<1x15x128xbf16>
      %c0_63 = arith.constant 0 : index
      %c1_64 = arith.constant 1 : index
      %c0_65 = arith.constant 0 : index
      %91 = vector.load %arg10[%c0_63, %c1_64, %c0_65] : memref<10x16x384xbf16, #tpu.memory_space<vmem>>, vector<1x15x128xbf16>
      tpu.vector_store %arg10[%c0_63, %c1_64, %c0_65], %90 {strides = array<i32>} : memref<10x16x384xbf16, #tpu.memory_space<vmem>>, vector<1x15x128xbf16>,
      %c0_66 = arith.constant 0 : index
      %c0_67 = arith.constant 0 : index
      %c128_68 = arith.constant 128 : index
      %92 = vector.load %arg10[%c0_66, %c0_67, %c128_68] : memref<10x16x384xbf16, #tpu.memory_space<vmem>>, vector<1x16x128xbf16>
      tpu.vector_store %arg10[%c0_66, %c0_67, %c128_68], %89 {strides = array<i32>} : memref<10x16x384xbf16, #tpu.memory_space<vmem>>, vector<1x16x128xbf16>,
      %93 = vector.extract_strided_slice %89 {offsets = [0, 1, 0], sizes = [1, 15, 128], strides = [1, 1, 1]} : vector<1x16x128xbf16> to vector<1x15x128xbf16>
      %c0_69 = arith.constant 0 : index
      %c0_70 = arith.constant 0 : index
      %c256_71 = arith.constant 256 : index
      %94 = vector.load %arg10[%c0_69, %c0_70, %c256_71] : memref<10x16x384xbf16, #tpu.memory_space<vmem>>, vector<1x15x128xbf16>
      tpu.vector_store %arg10[%c0_69, %c0_70, %c256_71], %93 {strides = array<i32>} : memref<10x16x384xbf16, #tpu.memory_space<vmem>>, vector<1x15x128xbf16>,
    } else {
    }
    %c1_i32 = arith.constant 1 : i32
    %41 = arith.cmpi eq, %arg1, %c1_i32 : i32
    %42 = arith.extui %41 : i1 to i32
    %c0_i32_29 = arith.constant 0 : i32
    %43 = arith.cmpi ne, %42, %c0_i32_29 : i32
    scf.if %43 {
      %cst_56 = arith.constant 0.000000e+00 : bf16
      %69 = vector.broadcast %cst_56 : bf16 to vector<1x16x384xbf16>
      %c9 = arith.constant 9 : index
      %c0_57 = arith.constant 0 : index
      %c0_58 = arith.constant 0 : index
      %70 = vector.load %arg10[%c9, %c0_57, %c0_58] : memref<10x16x384xbf16, #tpu.memory_space<vmem>>, vector<1x16x384xbf16>
      tpu.vector_store %arg10[%c9, %c0_57, %c0_58], %69 {strides = array<i32>} : memref<10x16x384xbf16, #tpu.memory_space<vmem>>, vector<1x16x384xbf16>,
    } else {
    }
    %c1_i32_30 = arith.constant 1 : i32
    %44 = arith.cmpi slt, %arg1, %c1_i32_30 : i32
    %45 = arith.extui %44 : i1 to i32
    %c0_i32_31 = arith.constant 0 : i32
    %46 = arith.cmpi ne, %45, %c0_i32_31 : i32
    scf.if %46 {
      %c8_i32_56 = arith.constant 8 : i32
      %69 = arith.addi %1, %c8_i32_56 : i32
      %c0_57 = arith.constant 0 : index
      %70 = arith.index_cast %69 : i32 to index
      %c0_58 = arith.constant 0 : index
      %c0_59 = arith.constant 0 : index
      %71 = vector.load %arg2[%c0_57, %70, %c0_58, %c0_59] : memref<1x16x16x64xf32, #tpu.memory_space<vmem>>, vector<1x1x16x64xf32>
      %72 = vector.shape_cast %71 : vector<1x1x16x64xf32> to vector<1x16x64xf32>
      %73 = vector.shape_cast %72 : vector<1x16x64xf32> to vector<16x64xf32>
      %74 = vector.broadcast %2 : vector<1x64xf32> to vector<16x64xf32>
      %75 = arith.mulf %73, %74 : vector<16x64xf32>
      %76 = vector.broadcast %3 : vector<1x64xf32> to vector<16x64xf32>
      %77 = arith.addf %75, %76 : vector<16x64xf32>
      %cst_60 = arith.constant 0.000000e+00 : f32
      %78 = vector.broadcast %cst_60 : f32 to vector<16x64xf32>
      %79 = arith.maximumf %77, %78 : vector<16x64xf32>
      %80 = arith.truncf %79 : vector<16x64xf32> to vector<16x64xbf16>
      %cst_61 = arith.constant dense<0.000000e+00> : vector<16x128xf32>
      %81 = tpu.matmul %80, %6, %cst_61 {dimension_numbers = #tpu.dot_dimension_numbers<[1], [0], [0], [1], [0, 0, 1, 1], [], []>} : vector<16x64xbf16>, vector<64x128xbf16>, vector<16x128xf32> -> vector<16x128xf32>
      %82 = vector.broadcast %4 : vector<1x128xf32> to vector<16x128xf32>
      %83 = arith.mulf %81, %82 : vector<16x128xf32>
      %84 = vector.broadcast %5 : vector<1x128xf32> to vector<16x128xf32>
      %85 = arith.addf %83, %84 : vector<16x128xf32>
      %cst_62 = arith.constant 0.000000e+00 : f32
      %86 = vector.broadcast %cst_62 : f32 to vector<16x128xf32>
      %87 = arith.maximumf %85, %86 : vector<16x128xf32>
      %88 = arith.truncf %87 : vector<16x128xf32> to vector<16x128xbf16>
      %89 = vector.shape_cast %88 : vector<16x128xbf16> to vector<1x16x128xbf16>
      %90 = vector.extract_strided_slice %89 {offsets = [0, 0, 0], sizes = [1, 15, 128], strides = [1, 1, 1]} : vector<1x16x128xbf16> to vector<1x15x128xbf16>
      %c9 = arith.constant 9 : index
      %c1_63 = arith.constant 1 : index
      %c0_64 = arith.constant 0 : index
      %91 = vector.load %arg10[%c9, %c1_63, %c0_64] : memref<10x16x384xbf16, #tpu.memory_space<vmem>>, vector<1x15x128xbf16>
      tpu.vector_store %arg10[%c9, %c1_63, %c0_64], %90 {strides = array<i32>} : memref<10x16x384xbf16, #tpu.memory_space<vmem>>, vector<1x15x128xbf16>,
      %c9_65 = arith.constant 9 : index
      %c0_66 = arith.constant 0 : index
      %c128_67 = arith.constant 128 : index
      %92 = vector.load %arg10[%c9_65, %c0_66, %c128_67] : memref<10x16x384xbf16, #tpu.memory_space<vmem>>, vector<1x16x128xbf16>
      tpu.vector_store %arg10[%c9_65, %c0_66, %c128_67], %89 {strides = array<i32>} : memref<10x16x384xbf16, #tpu.memory_space<vmem>>, vector<1x16x128xbf16>,
      %93 = vector.extract_strided_slice %89 {offsets = [0, 1, 0], sizes = [1, 15, 128], strides = [1, 1, 1]} : vector<1x16x128xbf16> to vector<1x15x128xbf16>
      %c9_68 = arith.constant 9 : index
      %c0_69 = arith.constant 0 : index
      %c256_70 = arith.constant 256 : index
      %94 = vector.load %arg10[%c9_68, %c0_69, %c256_70] : memref<10x16x384xbf16, #tpu.memory_space<vmem>>, vector<1x15x128xbf16>
      tpu.vector_store %arg10[%c9_68, %c0_69, %c256_70], %93 {strides = array<i32>} : memref<10x16x384xbf16, #tpu.memory_space<vmem>>, vector<1x15x128xbf16>,
    } else {
    }
    %c0_32 = arith.constant 0 : index
    %c0_33 = arith.constant 0 : index
    %c0_34 = arith.constant 0 : index
    %47 = vector.load %arg10[%c0_32, %c0_33, %c0_34] : memref<10x16x384xbf16, #tpu.memory_space<vmem>>, vector<8x16x384xbf16>
    %48 = vector.shape_cast %47 : vector<8x16x384xbf16> to vector<128x384xbf16>
    %c0_35 = arith.constant 0 : index
    %c0_36 = arith.constant 0 : index
    %c0_37 = arith.constant 0 : index
    %49 = vector.load %arg8[%c0_35, %c0_36, %c0_37] : memref<3x384x32xbf16, #tpu.memory_space<vmem>>, vector<1x384x32xbf16>
    %50 = vector.shape_cast %49 : vector<1x384x32xbf16> to vector<384x32xbf16>
    %cst_38 = arith.constant dense<0.000000e+00> : vector<128x32xf32>
    %51 = tpu.matmul %48, %50, %cst_38 {dimension_numbers = #tpu.dot_dimension_numbers<[1], [0], [0], [1], [0, 0, 1, 1], [], []>} : vector<128x384xbf16>, vector<384x32xbf16>, vector<128x32xf32> -> vector<128x32xf32>
    %c1_39 = arith.constant 1 : index
    %c0_40 = arith.constant 0 : index
    %c0_41 = arith.constant 0 : index
    %52 = vector.load %arg10[%c1_39, %c0_40, %c0_41] : memref<10x16x384xbf16, #tpu.memory_space<vmem>>, vector<8x16x384xbf16>
    %53 = vector.shape_cast %52 : vector<8x16x384xbf16> to vector<128x384xbf16>
    %c1_42 = arith.constant 1 : index
    %c0_43 = arith.constant 0 : index
    %c0_44 = arith.constant 0 : index
    %54 = vector.load %arg8[%c1_42, %c0_43, %c0_44] : memref<3x384x32xbf16, #tpu.memory_space<vmem>>, vector<1x384x32xbf16>
    %55 = vector.shape_cast %54 : vector<1x384x32xbf16> to vector<384x32xbf16>
    %cst_45 = arith.constant dense<0.000000e+00> : vector<128x32xf32>
    %56 = tpu.matmul %53, %55, %cst_45 {dimension_numbers = #tpu.dot_dimension_numbers<[1], [0], [0], [1], [0, 0, 1, 1], [], []>} : vector<128x384xbf16>, vector<384x32xbf16>, vector<128x32xf32> -> vector<128x32xf32>
    %57 = arith.addf %51, %56 : vector<128x32xf32>
    %c2 = arith.constant 2 : index
    %c0_46 = arith.constant 0 : index
    %c0_47 = arith.constant 0 : index
    %58 = vector.load %arg10[%c2, %c0_46, %c0_47] : memref<10x16x384xbf16, #tpu.memory_space<vmem>>, vector<8x16x384xbf16>
    %59 = vector.shape_cast %58 : vector<8x16x384xbf16> to vector<128x384xbf16>
    %c2_48 = arith.constant 2 : index
    %c0_49 = arith.constant 0 : index
    %c0_50 = arith.constant 0 : index
    %60 = vector.load %arg8[%c2_48, %c0_49, %c0_50] : memref<3x384x32xbf16, #tpu.memory_space<vmem>>, vector<1x384x32xbf16>
    %61 = vector.shape_cast %60 : vector<1x384x32xbf16> to vector<384x32xbf16>
    %cst_51 = arith.constant dense<0.000000e+00> : vector<128x32xf32>
    %62 = tpu.matmul %59, %61, %cst_51 {dimension_numbers = #tpu.dot_dimension_numbers<[1], [0], [0], [1], [0, 0, 1, 1], [], []>} : vector<128x384xbf16>, vector<384x32xbf16>, vector<128x32xf32> -> vector<128x32xf32>
    %63 = arith.addf %57, %62 : vector<128x32xf32>
    %64 = vector.shape_cast %63 : vector<128x32xf32> to vector<8x16x32xf32>
    %65 = tpu.concatenate %64, %12 in 2 : vector<8x16x32xf32>, vector<8x16x64xf32> -> vector<8x16x96xf32>
    %c0_52 = arith.constant 0 : index
    %c0_53 = arith.constant 0 : index
    %c0_54 = arith.constant 0 : index
    %c0_55 = arith.constant 0 : index
    %66 = vector.load %arg9[%c0_52, %c0_53, %c0_54, %c0_55] : memref<1x8x16x96xf32, #tpu.memory_space<vmem>>, vector<1x8x16x96xf32>
    %67 = vector.shape_cast %66 : vector<1x8x16x96xf32> to vector<8x16x96xf32>
    %68 = vector.shape_cast %65 : vector<8x16x96xf32> to vector<1x8x16x96xf32>
    tpu.vector_store %arg9[%c0_52, %c0_53, %c0_54, %c0_55], %68 {strides = array<i32>} : memref<1x8x16x96xf32, #tpu.memory_space<vmem>>, vector<1x8x16x96xf32>,
    return
  }
  func.func @transform_0(%arg0: i32, %arg1: i32) -> (i32, i32, i32, i32) {
    %c0_i32 = arith.constant 0 : i32
    %c0_i32_0 = arith.constant 0 : i32
    %c0_i32_1 = arith.constant 0 : i32
    %c0_i32_2 = arith.constant 0 : i32
    return %arg0, %c0_i32, %c0_i32_0, %c0_i32_1 : i32, i32, i32, i32
  }
  func.func @transform_1(%arg0: i32, %arg1: i32) -> (i32, i32) {
    %c0_i32 = arith.constant 0 : i32
    %c0_i32_0 = arith.constant 0 : i32
    %c0_i32_1 = arith.constant 0 : i32
    return %c0_i32, %c0_i32_0 : i32, i32
  }
  func.func @transform_2(%arg0: i32, %arg1: i32) -> (i32, i32) {
    %c0_i32 = arith.constant 0 : i32
    %c0_i32_0 = arith.constant 0 : i32
    %c0_i32_1 = arith.constant 0 : i32
    return %c0_i32, %c0_i32_0 : i32, i32
  }
  func.func @transform_3(%arg0: i32, %arg1: i32) -> (i32, i32) {
    %c0_i32 = arith.constant 0 : i32
    %c0_i32_0 = arith.constant 0 : i32
    %c0_i32_1 = arith.constant 0 : i32
    return %c0_i32, %c0_i32_0 : i32, i32
  }
  func.func @transform_4(%arg0: i32, %arg1: i32) -> (i32, i32) {
    %c0_i32 = arith.constant 0 : i32
    %c0_i32_0 = arith.constant 0 : i32
    %c0_i32_1 = arith.constant 0 : i32
    return %c0_i32, %c0_i32_0 : i32, i32
  }
  func.func @transform_5(%arg0: i32, %arg1: i32) -> (i32, i32) {
    %c0_i32 = arith.constant 0 : i32
    %c0_i32_0 = arith.constant 0 : i32
    %c0_i32_1 = arith.constant 0 : i32
    return %c0_i32, %c0_i32_0 : i32, i32
  }
  func.func @transform_6(%arg0: i32, %arg1: i32) -> (i32, i32, i32) {
    %c0_i32 = arith.constant 0 : i32
    %c0_i32_0 = arith.constant 0 : i32
    %c0_i32_1 = arith.constant 0 : i32
    %c0_i32_2 = arith.constant 0 : i32
    return %c0_i32, %c0_i32_0, %c0_i32_1 : i32, i32, i32
  }
  func.func @transform_7(%arg0: i32, %arg1: i32) -> (i32, i32, i32, i32) {
    %c0_i32 = arith.constant 0 : i32
    %c0_i32_0 = arith.constant 0 : i32
    %c0_i32_1 = arith.constant 0 : i32
    return %arg0, %arg1, %c0_i32, %c0_i32_0 : i32, i32, i32, i32
  }
}

</mosaic_0001>

<llo_original>
// kernel: bottleneck_forward_nchw.1
$region0: #{bottleneck_forward_nchw.1}
  #allocation0 [shape = 'u32[]', space=smem, size = 0x4, offset = 0x4, fixed_abs, tag = 'smem constant byte address 0x4 - core index']
  #allocation1 [shape = 'u32[144,128]{1,0:T(1,128)}', space=vmem, size = 0x12000, scoped, tag = 'internal scratch']
  #allocation2 [shape = 'bf16[10,16,384]{2,1,0:T(8,128)(2,1)}', space=vmem, size = 0x1e000, scoped, tag = 'scratch operand']
  %s0 = inlined_call_operand.vmem [shape: f32[2,16,16,64], index: 0, kind: input, shape index: {}]
  %s1 = inlined_call_operand.vmem [shape: f32[1,64], index: 1, kind: input, shape index: {}]
  %s2 = inlined_call_operand.vmem [shape: f32[1,64], index: 2, kind: input, shape index: {}]
  %s3 = inlined_call_operand.vmem [shape: bf16[64,128], index: 3, kind: input, shape index: {}]
  %s4 = inlined_call_operand.vmem [shape: f32[1,128], index: 4, kind: input, shape index: {}]
  %s5 = inlined_call_operand.vmem [shape: f32[1,128], index: 5, kind: input, shape index: {}]
  %s6 = inlined_call_operand.vmem [shape: bf16[3,384,32], index: 6, kind: input, shape index: {}]
  %s7 = inlined_call_operand.hbm [shape: f32[2,16,16,96], index: 7, kind: output, shape index: {}]
  %s8 = sld [smem:[#allocation0]]
  $region77: #{bottleneck_forward_nchw.1} parent=0
    _
  %s10 = ssub.s32 1, %s8
  %s11 = scalar_select 0, %s10, %s8
  $region1: #{bottleneck_forward_nchw.1} parent=0
    #allocation3 [shape = 'u8[131072]{0}', space=vmem, size = 0x20000, scoped, tag = 'output window, operand 0']
    #allocation4 [shape = 's32[2]{0}', space=sflag, size = 0x8, scoped, tag = 'scoped memory for bottleneck_forward_nchw.1']
    %12 = vsyncpa [#allocation4], 0
    %s13 = scalar_lea.sflag [#allocation4], 1
    %14 = vsyncpa %s13, 0
    loop: start=0, step=1, limit=6
    $region2: #{bottleneck_forward_nchw.1} parent=1 // loop_pre_header
      _
    $region3: #{bottleneck_forward_nchw.1} parent=1 // loop_header
      %s16 = sphi 0, %s20
      %p17 = scmp.ge.s32.totalorder %s16, 6
      %s23 = sphi 0, %s35
      %s24 = sphi 0, %s31
      %s25 = sphi 0, %s23
      %s26 = sphi 0, %s24
      %s27 = sphi 0, %s25
      %s28 = sphi 0, %s26
      %s38 = sphi 0, %s40
      %s41 = sphi 0, %s38
      %s42 = sphi 0, %s41
      %s58 = sphi 0, %s42
      %s62 = sphi 0, %s62
      %s64 = sphi 0, %s62
      %s65 = sphi 0, %s64
      %s79 = sphi 0, %s65
      %s83 = sphi 0, %s83
      %s85 = sphi 0, %s83
      %s86 = sphi 0, %s85
      %s100 = sphi 0, %s86
      %s104 = sphi 0, %s104
      %s106 = sphi 0, %s104
      %s107 = sphi 0, %s106
      %s121 = sphi 0, %s107
      %s125 = sphi 0, %s125
      %s127 = sphi 0, %s125
      %s128 = sphi 0, %s127
      %s142 = sphi 0, %s128
      %s146 = sphi 0, %s146
      %s148 = sphi 0, %s146
      %s149 = sphi 0, %s148
      %s163 = sphi 0, %s149
      %s167 = sphi 0, %s167
      %s169 = sphi 0, %s167
      %s170 = sphi 0, %s169
      %s184 = sphi 0, %s170
      %s192 = sphi 0, %s194
      %s195 = sphi 0, %s192
      %s196 = sphi 0, %s195
      %s212 = sphi 0, %s196
    $region4: #{bottleneck_forward_nchw.1} parent=1 // loop_header_branch
      %19 = sbr.rel (%p17) target = $region8
    $region5: #{bottleneck_forward_nchw.1} parent=1 // loop_body
      %s21 = ssub.s32 %s16, 1
      %s22 = ssub.s32 %s16, 2
      %s29 = sadd.s32 1, %s24
      %p30 = scmp.ge.s32.totalorder %s29, 2
      %s31 = scalar_select %p30, 0, %s29
      %s32 = sadd.s32 1, %s23
      %s33 = scalar_select %p30, %s32, %s23
      %p34 = scmp.ge.s32.totalorder %s33, 2
      %s35 = scalar_select %p34, 0, %s33
      %s36 = ssub.s32 %s23, %s35
      %p37 = scmp.eq.s32.totalorder %s36, 0
      %s39 = sadd.s32 %s38, 1
      %s40 = scalar_select %p37, %s38, %s39
      %p43 = pneg %p37
      %p44 = scmp.eq.s32.totalorder %s16, 3
      %p45 = por %p43, %p44
      %p46 = scmp.ne.s32.totalorder %s38, %s41
      %p47 = scmp.eq.s32.totalorder %s16, 0
      %p48 = por %p46, %p47
      %p49 = scmp.ne.s32.totalorder %s38, %s41
      %p50 = scmp.eq.s32.totalorder %s21, 3
      %p51 = por %p49, %p50
      %p52 = scmp.ne.s32.totalorder %s41, %s42
      %p53 = scmp.eq.s32.totalorder %s21, 0
      %p54 = por %p52, %p53
      %p55 = scmp.ne.s32.totalorder %s41, %s42
      %p56 = scmp.eq.s32.totalorder %s22, 3
      %p57 = por %p55, %p56
      %p59 = scmp.ne.s32.totalorder %s42, %s58
      %p60 = scmp.eq.s32.totalorder %s22, 0
      %p61 = por %p59, %p60
      %s63 = sadd.s32 %s62, 1
      %p66 = scmp.eq.s32.totalorder %s16, 3
      %p67 = scmp.ne.s32.totalorder %s62, %s64
      %p68 = scmp.eq.s32.totalorder %s16, 0
      %p69 = por %p67, %p68
      %p70 = scmp.ne.s32.totalorder %s62, %s64
      %p71 = scmp.eq.s32.totalorder %s21, 3
      %p72 = por %p70, %p71
      %p73 = scmp.ne.s32.totalorder %s64, %s65
      %p74 = scmp.eq.s32.totalorder %s21, 0
      %p75 = por %p73, %p74
      %p76 = scmp.ne.s32.totalorder %s64, %s65
      %p77 = scmp.eq.s32.totalorder %s22, 3
      %p78 = por %p76, %p77
      %p80 = scmp.ne.s32.totalorder %s65, %s79
      %p81 = scmp.eq.s32.totalorder %s22, 0
      %p82 = por %p80, %p81
      %s84 = sadd.s32 %s83, 1
      %p87 = scmp.eq.s32.totalorder %s16, 3
      %p88 = scmp.ne.s32.totalorder %s83, %s85
      %p89 = scmp.eq.s32.totalorder %s16, 0
      %p90 = por %p88, %p89
      %p91 = scmp.ne.s32.totalorder %s83, %s85
      %p92 = scmp.eq.s32.totalorder %s21, 3
      %p93 = por %p91, %p92
      %p94 = scmp.ne.s32.totalorder %s85, %s86
      %p95 = scmp.eq.s32.totalorder %s21, 0
      %p96 = por %p94, %p95
      %p97 = scmp.ne.s32.totalorder %s85, %s86
      %p98 = scmp.eq.s32.totalorder %s22, 3
      %p99 = por %p97, %p98
      %p101 = scmp.ne.s32.totalorder %s86, %s100
      %p102 = scmp.eq.s32.totalorder %s22, 0
      %p103 = por %p101, %p102
      %s105 = sadd.s32 %s104, 1
      %p108 = scmp.eq.s32.totalorder %s16, 3
      %p109 = scmp.ne.s32.totalorder %s104, %s106
      %p110 = scmp.eq.s32.totalorder %s16, 0
      %p111 = por %p109, %p110
      %p112 = scmp.ne.s32.totalorder %s104, %s106
      %p113 = scmp.eq.s32.totalorder %s21, 3
      %p114 = por %p112, %p113
      %p115 = scmp.ne.s32.totalorder %s106, %s107
      %p116 = scmp.eq.s32.totalorder %s21, 0
      %p117 = por %p115, %p116
      %p118 = scmp.ne.s32.totalorder %s106, %s107
      %p119 = scmp.eq.s32.totalorder %s22, 3
      %p120 = por %p118, %p119
      %p122 = scmp.ne.s32.totalorder %s107, %s121
      %p123 = scmp.eq.s32.totalorder %s22, 0
      %p124 = por %p122, %p123
      %s126 = sadd.s32 %s125, 1
      %p129 = scmp.eq.s32.totalorder %s16, 3
      %p130 = scmp.ne.s32.totalorder %s125, %s127
      %p131 = scmp.eq.s32.totalorder %s16, 0
      %p132 = por %p130, %p131
      %p133 = scmp.ne.s32.totalorder %s125, %s127
      %p134 = scmp.eq.s32.totalorder %s21, 3
      %p135 = por %p133, %p134
      %p136 = scmp.ne.s32.totalorder %s127, %s128
      %p137 = scmp.eq.s32.totalorder %s21, 0
      %p138 = por %p136, %p137
      %p139 = scmp.ne.s32.totalorder %s127, %s128
      %p140 = scmp.eq.s32.totalorder %s22, 3
      %p141 = por %p139, %p140
      %p143 = scmp.ne.s32.totalorder %s128, %s142
      %p144 = scmp.eq.s32.totalorder %s22, 0
      %p145 = por %p143, %p144
      %s147 = sadd.s32 %s146, 1
      %p150 = scmp.eq.s32.totalorder %s16, 3
      %p151 = scmp.ne.s32.totalorder %s146, %s148
      %p152 = scmp.eq.s32.totalorder %s16, 0
      %p153 = por %p151, %p152
      %p154 = scmp.ne.s32.totalorder %s146, %s148
      %p155 = scmp.eq.s32.totalorder %s21, 3
      %p156 = por %p154, %p155
      %p157 = scmp.ne.s32.totalorder %s148, %s149
      %p158 = scmp.eq.s32.totalorder %s21, 0
      %p159 = por %p157, %p158
      %p160 = scmp.ne.s32.totalorder %s148, %s149
      %p161 = scmp.eq.s32.totalorder %s22, 3
      %p162 = por %p160, %p161
      %p164 = scmp.ne.s32.totalorder %s149, %s163
      %p165 = scmp.eq.s32.totalorder %s22, 0
      %p166 = por %p164, %p165
      %s168 = sadd.s32 %s167, 1
      %p171 = scmp.eq.s32.totalorder %s16, 3
      %p172 = scmp.ne.s32.totalorder %s167, %s169
      %p173 = scmp.eq.s32.totalorder %s16, 0
      %p174 = por %p172, %p173
      %p175 = scmp.ne.s32.totalorder %s167, %s169
      %p176 = scmp.eq.s32.totalorder %s21, 3
      %p177 = por %p175, %p176
      %p178 = scmp.ne.s32.totalorder %s169, %s170
      %p179 = scmp.eq.s32.totalorder %s21, 0
      %p180 = por %p178, %p179
      %p181 = scmp.ne.s32.totalorder %s169, %s170
      %p182 = scmp.eq.s32.totalorder %s22, 3
      %p183 = por %p181, %p182
      %p185 = scmp.ne.s32.totalorder %s170, %s184
      %p186 = scmp.eq.s32.totalorder %s22, 0
      %p187 = por %p185, %p186
      %s188 = ssub.s32 %s23, %s35
      %s189 = ssub.s32 %s24, %s31
      %s190 = sor.u32 %s188, %s189
      %p191 = scmp.eq.s32.totalorder %s190, 0
      %s193 = sadd.s32 %s192, 1
      %s194 = scalar_select %p191, %s192, %s193
      %p197 = pneg %p191
      %p198 = scmp.eq.s32.totalorder %s16, 3
      %p199 = por %p197, %p198
      %p200 = scmp.ne.s32.totalorder %s192, %s195
      %p201 = scmp.eq.s32.totalorder %s16, 0
      %p202 = por %p200, %p201
      %p203 = scmp.ne.s32.totalorder %s192, %s195
      %p204 = scmp.eq.s32.totalorder %s21, 3
      %p205 = por %p203, %p204
      %p206 = scmp.ne.s32.totalorder %s195, %s196
      %p207 = scmp.eq.s32.totalorder %s21, 0
      %p208 = por %p206, %p207
      %p209 = scmp.ne.s32.totalorder %s195, %s196
      %p210 = scmp.eq.s32.totalorder %s22, 3
      %p211 = por %p209, %p210
      %p213 = scmp.ne.s32.totalorder %s196, %s212
      %p214 = scmp.eq.s32.totalorder %s22, 0
      %p215 = por %p213, %p214
      %p216 = scmp.le.s32.totalorder 1, %s16
      %p217 = scmp.lt.s32.totalorder %s16, 5
      %p218 = pnand %p216, %p217
      %p219 = pneg %p218
      // Predicated region
      $region9: #{bottleneck_forward_nchw.1} parent=5 // pred_check
        _
      $region10: #{bottleneck_forward_nchw.1} parent=5 // pred_check_branch
        %221 = sbr.rel (%p218) target = $region12
      $region11: #{bottleneck_forward_nchw.1} parent=5 // pred_region
        %s222 = ssub.s32 %s16, 1
        // Predicated region
        $region13: #{bottleneck_forward_nchw.1} parent=11 // pred_check
          %p223 = pneg %p75
        $region14: #{bottleneck_forward_nchw.1} parent=11 // pred_check_branch
          %225 = sbr.rel (%p223) target = $region16
        $region15: #{bottleneck_forward_nchw.1} parent=11 // pred_region
          _
        $region16: #{bottleneck_forward_nchw.1} parent=11 // pred_fallthru
          _
        // Predicated region
        $region17: #{bottleneck_forward_nchw.1} parent=11 // pred_check
          %p226 = pneg %p96
        $region18: #{bottleneck_forward_nchw.1} parent=11 // pred_check_branch
          %228 = sbr.rel (%p226) target = $region20
        $region19: #{bottleneck_forward_nchw.1} parent=11 // pred_region
          _
        $region20: #{bottleneck_forward_nchw.1} parent=11 // pred_fallthru
          _
        // Predicated region
        $region21: #{bottleneck_forward_nchw.1} parent=11 // pred_check
          %p229 = pneg %p117
        $region22: #{bottleneck_forward_nchw.1} parent=11 // pred_check_branch
          %231 = sbr.rel (%p229) target = $region24
        $region23: #{bottleneck_forward_nchw.1} parent=11 // pred_region
          _
        $region24: #{bottleneck_forward_nchw.1} parent=11 // pred_fallthru
          _
        // Predicated region
        $region25: #{bottleneck_forward_nchw.1} parent=11 // pred_check
          %p232 = pneg %p138
        $region26: #{bottleneck_forward_nchw.1} parent=11 // pred_check_branch
          %234 = sbr.rel (%p232) target = $region28
        $region27: #{bottleneck_forward_nchw.1} parent=11 // pred_region
          _
        $region28: #{bottleneck_forward_nchw.1} parent=11 // pred_fallthru
          _
        // Predicated region
        $region29: #{bottleneck_forward_nchw.1} parent=11 // pred_check
          %p235 = pneg %p159
        $region30: #{bottleneck_forward_nchw.1} parent=11 // pred_check_branch
          %237 = sbr.rel (%p235) target = $region32
        $region31: #{bottleneck_forward_nchw.1} parent=11 // pred_region
          _
        $region32: #{bottleneck_forward_nchw.1} parent=11 // pred_fallthru
          _
        // Predicated region
        $region33: #{bottleneck_forward_nchw.1} parent=11 // pred_check
          %p238 = pneg %p180
        $region34: #{bottleneck_forward_nchw.1} parent=11 // pred_check_branch
          %240 = sbr.rel (%p238) target = $region36
        $region35: #{bottleneck_forward_nchw.1} parent=11 // pred_region
          _
        $region36: #{bottleneck_forward_nchw.1} parent=11 // pred_fallthru
          _
      $region12: #{bottleneck_forward_nchw.1} parent=5 // pred_fallthru
        _
      %p241 = scmp.lt.s32.totalorder %s16, 4
      // Predicated region
      $region37: #{bottleneck_forward_nchw.1} parent=5 // pred_check
        %p242 = pneg %p241
      $region38: #{bottleneck_forward_nchw.1} parent=5 // pred_check_branch
        %244 = sbr.rel (%p242) target = $region40
      $region39: #{bottleneck_forward_nchw.1} parent=5 // pred_region
        // Predicated region
        $region41: #{bottleneck_forward_nchw.1} parent=39 // pred_check
          %p245 = pneg %p48
        $region42: #{bottleneck_forward_nchw.1} parent=39 // pred_check_branch
          %247 = sbr.rel (%p245) target = $region44
        $region43: #{bottleneck_forward_nchw.1} parent=39 // pred_region
          %p248 = scmp.lt.s32.totalorder %s23, 1
          %s249 = scalar_select %p248, %s23, 1
          %s250 = smul.addr %s249, 32
          %s251 = smul.addr %s250, 8
          %s252 = scalar_lea.vmem %s0, %s251
        $region44: #{bottleneck_forward_nchw.1} parent=39 // pred_fallthru
          _
      $region40: #{bottleneck_forward_nchw.1} parent=5 // pred_fallthru
        _
      %p253 = scmp.le.s32.totalorder 1, %s16
      %p254 = scmp.lt.s32.totalorder %s16, 5
      %p255 = pnand %p253, %p254
      %p256 = pneg %p255
      // Predicated region
      $region45: #{bottleneck_forward_nchw.1} parent=5 // pred_check
        _
      $region46: #{bottleneck_forward_nchw.1} parent=5 // pred_check_branch
        %258 = sbr.rel (%p255) target = $region48
      $region47: #{bottleneck_forward_nchw.1} parent=5 // pred_region
        %s259 = ssub.s32 %s16, 1
        %p260 = scmp.lt.s32.totalorder %s25, 1
        %s261 = scalar_select %p260, %s25, 1
        %s262 = smul.addr %s261, 32
        %s263 = smul.addr %s262, 8
        %s264 = scalar_lea.vmem %s0, %s263
        %p265 = pneg %p54
        %p266 = pneg %p51
        %p267 = pneg %p75
        %p268 = pneg %p72
        %p269 = pneg %p96
        %p270 = pneg %p93
        %p271 = pneg %p117
        %p272 = pneg %p114
        %p273 = pneg %p138
        %p274 = pneg %p135
        %p275 = pneg %p159
        %p276 = pneg %p156
        %p277 = pneg %p180
        %p278 = pneg %p177
        %p279 = pneg %p208
        %p280 = pneg %p205
        %s281 = sand.u32 %s195, 1
        %s282 = scalar_lea.sflag [#allocation4], %s281
        %s283 = sand.u32 %s195, 1
        %s284 = smul.addr %s283, 128
        %s285 = scalar_lea.vmem [#allocation3], %s284
        %p286 = scmp.lt.s32.totalorder %s25, 1
        %s287 = scalar_select %p286, %s25, 1
        %s288 = smul.addr %s287, 32
        %s289 = smul.addr %s288, 8
        %s290 = scalar_lea.vmem %s0, %s289
        %s291 = smul.u32 8, %s26
        %s293 = smul.u32 %s26, 8
        %v294 = vld [vmem:[%s1] sm:$0x1]
        %v295 = vld [vmem:[%s2] sm:$0x1]
        %v296 = vld [vmem:[%s4] sm:$0x1]
        %v297 = vld [vmem:[%s5] sm:$0x1]
        %v298 = vld [vmem:[%s3] sm:$0xf]
        %v299 = vld [vmem:[%s3 + $0x4] sm:$0xf]
        %v300 = vld [vmem:[%s3 + $0x8] sm:$0xf]
        %v301 = vld [vmem:[%s3 + $0xc] sm:$0xf]
        %v302 = vld [vmem:[%s3 + $0x10] sm:$0xf]
        %v303 = vld [vmem:[%s3 + $0x14] sm:$0xf]
        %v304 = vld [vmem:[%s3 + $0x18] sm:$0xf]
        %v305 = vld [vmem:[%s3 + $0x1c] sm:$0xf]
        %vm306 = vcmask 1040384
        %vm307 = vsmask.f32 256
        %vm308 = vmand %vm306, %vm307
        %v309 = vld [vmem:[#allocation2] sm:$0x1]
        %v310 = vsel %vm308, 0, %v309
        %311 = vst [vmem:[#allocation2] sm:$0x1] %v310
        %v312 = vld [vmem:[#allocation2 + $0x18] sm:$0x1]
        %v313 = vsel %vm308, 0, %v312
        %314 = vst [vmem:[#allocation2 + $0x18] sm:$0x1] %v313
        %v315 = vld [vmem:[#allocation2 + $0x30] sm:$0x1]
        %v316 = vsel %vm308, 0, %v315
        %317 = vst [vmem:[#allocation2 + $0x30] sm:$0x1] %v316
        %v318 = vld [vmem:[#allocation2 + $0x48] sm:$0x1]
        %v319 = vsel %vm308, 0, %v318
        %320 = vst [vmem:[#allocation2 + $0x48] sm:$0x1] %v319
        %v321 = vld [vmem:[#allocation2 + $0x60] sm:$0x1]
        %v322 = vsel %vm308, 0, %v321
        %323 = vst [vmem:[#allocation2 + $0x60] sm:$0x1] %v322
        %v324 = vld [vmem:[#allocation2 + $0x78] sm:$0x1]
        %v325 = vsel %vm308, 0, %v324
        %326 = vst [vmem:[#allocation2 + $0x78] sm:$0x1] %v325
        %v327 = vld [vmem:[#allocation2 + $0x90] sm:$0x1]
        %v328 = vsel %vm308, 0, %v327
        %329 = vst [vmem:[#allocation2 + $0x90] sm:$0x1] %v328
        %v330 = vld [vmem:[#allocation2 + $0xa8] sm:$0x1]
        %v331 = vsel %vm308, 0, %v330
        %332 = vst [vmem:[#allocation2 + $0xa8] sm:$0x1] %v331
        %v333 = vld [vmem:[#allocation2 + $0xc0] sm:$0x1]
        %v334 = vsel %vm308, 0, %v333
        %335 = vst [vmem:[#allocation2 + $0xc0] sm:$0x1] %v334
        %v336 = vld [vmem:[#allocation2 + $0xd8] sm:$0x1]
        %v337 = vsel %vm308, 0, %v336
        %338 = vst [vmem:[#allocation2 + $0xd8] sm:$0x1] %v337
        %vm339 = vcmask 1043459
        %vm340 = vsmask.f32 7950
        %vm341 = vmand %vm339, %vm340
        %v342 = vld [vmem:[#allocation2 + $0x14] sm:$0x8]
        %v343 = vsel %vm341, 0, %v342
        %344 = vst [vmem:[#allocation2 + $0x14] sm:$0x8] %v343
        %v345 = vld [vmem:[#allocation2 + $0x2c] sm:$0x8]
        %v346 = vsel %vm341, 0, %v345
        %347 = vst [vmem:[#allocation2 + $0x2c] sm:$0x8] %v346
        %v348 = vld [vmem:[#allocation2 + $0x44] sm:$0x8]
        %v349 = vsel %vm341, 0, %v348
        %350 = vst [vmem:[#allocation2 + $0x44] sm:$0x8] %v349
        %v351 = vld [vmem:[#allocation2 + $0x5c] sm:$0x8]
        %v352 = vsel %vm341, 0, %v351
        %353 = vst [vmem:[#allocation2 + $0x5c] sm:$0x8] %v352
        %v354 = vld [vmem:[#allocation2 + $0x74] sm:$0x8]
        %v355 = vsel %vm341, 0, %v354
        %356 = vst [vmem:[#allocation2 + $0x74] sm:$0x8] %v355
        %v357 = vld [vmem:[#allocation2 + $0x8c] sm:$0x8]
        %v358 = vsel %vm341, 0, %v357
        %359 = vst [vmem:[#allocation2 + $0x8c] sm:$0x8] %v358
        %v360 = vld [vmem:[#allocation2 + $0xa4] sm:$0x8]
        %v361 = vsel %vm341, 0, %v360
        %362 = vst [vmem:[#allocation2 + $0xa4] sm:$0x8] %v361
        %v363 = vld [vmem:[#allocation2 + $0xbc] sm:$0x8]
        %v364 = vsel %vm341, 0, %v363
        %365 = vst [vmem:[#allocation2 + $0xbc] sm:$0x8] %v364
        %v366 = vld [vmem:[#allocation2 + $0xd4] sm:$0x8]
        %v367 = vsel %vm341, 0, %v366
        %368 = vst [vmem:[#allocation2 + $0xd4] sm:$0x8] %v367
        %v369 = vld [vmem:[#allocation2 + $0xec] sm:$0x8]
        %v370 = vsel %vm341, 0, %v369
        %371 = vst [vmem:[#allocation2 + $0xec] sm:$0x8] %v370
        %s372 = smul.u32 %s293, 16
        %s373 = scalar_lea.vmem %s290, %s372
        %v374 = vld [vmem:[%s373] sm:$0xff]
        %v375 = vld [vmem:[%s373 + $0x8] sm:$0xff]
        %v376 = vld [vmem:[%s373 + $0x10] sm:$0xff]
        %v377 = vld [vmem:[%s373 + $0x18] sm:$0xff]
        %v378 = vld [vmem:[%s373 + $0x20] sm:$0xff]
        %v379 = vld [vmem:[%s373 + $0x28] sm:$0xff]
        %v380 = vld [vmem:[%s373 + $0x30] sm:$0xff]
        %v381 = vld [vmem:[%s373 + $0x38] sm:$0xff]
        %v382 = vld [vmem:[%s373 + $0x40] sm:$0xff]
        %v383 = vld [vmem:[%s373 + $0x48] sm:$0xff]
        %v384 = vld [vmem:[%s373 + $0x50] sm:$0xff]
        %v385 = vld [vmem:[%s373 + $0x58] sm:$0xff]
        %v386 = vld [vmem:[%s373 + $0x60] sm:$0xff]
        %v387 = vld [vmem:[%s373 + $0x68] sm:$0xff]
        %v388 = vld [vmem:[%s373 + $0x70] sm:$0xff]
        %v389 = vld [vmem:[%s373 + $0x78] sm:$0xff]
        %v391 = vlaneseq
        %v392 = vshrl.u32 %v391, 7
        %v393 = vsub.s32 0, %v392
        %v394 = vrot.slane %v294, %v393
        %v396 = vmul.f32 %v374, %v394
        %v397 = vmul.f32 %v375, %v394
        %v398 = vmul.f32 %v376, %v394
        %v399 = vmul.f32 %v377, %v394
        %v400 = vmul.f32 %v378, %v394
        %v401 = vmul.f32 %v379, %v394
        %v402 = vmul.f32 %v380, %v394
        %v403 = vmul.f32 %v381, %v394
        %v404 = vmul.f32 %v382, %v394
        %v405 = vmul.f32 %v383, %v394
        %v406 = vmul.f32 %v384, %v394
        %v407 = vmul.f32 %v385, %v394
        %v408 = vmul.f32 %v386, %v394
        %v409 = vmul.f32 %v387, %v394
        %v410 = vmul.f32 %v388, %v394
        %v411 = vmul.f32 %v389, %v394
        %v413 = vlaneseq
        %v414 = vshrl.u32 %v413, 7
        %v415 = vsub.s32 0, %v414
        %v416 = vrot.slane %v295, %v415
        %v418 = vadd.f32 %v396, %v416
        %v419 = vadd.f32 %v397, %v416
        %v420 = vadd.f32 %v398, %v416
        %v421 = vadd.f32 %v399, %v416
        %v422 = vadd.f32 %v400, %v416
        %v423 = vadd.f32 %v401, %v416
        %v424 = vadd.f32 %v402, %v416
        %v425 = vadd.f32 %v403, %v416
        %v426 = vadd.f32 %v404, %v416
        %v427 = vadd.f32 %v405, %v416
        %v428 = vadd.f32 %v406, %v416
        %v429 = vadd.f32 %v407, %v416
        %v430 = vadd.f32 %v408, %v416
        %v431 = vadd.f32 %v409, %v416
        %v432 = vadd.f32 %v410, %v416
        %v433 = vadd.f32 %v411, %v416
        %v434 = vmax.f32 %v418, 0.0
        %v435 = vmax.f32 %v419, 0.0
        %v436 = vmax.f32 %v420, 0.0
        %v437 = vmax.f32 %v421, 0.0
        %v438 = vmax.f32 %v422, 0.0
        %v439 = vmax.f32 %v423, 0.0
        %v440 = vmax.f32 %v424, 0.0
        %v441 = vmax.f32 %v425, 0.0
        %v442 = vmax.f32 %v426, 0.0
        %v443 = vmax.f32 %v427, 0.0
        %v444 = vmax.f32 %v428, 0.0
        %v445 = vmax.f32 %v429, 0.0
        %v446 = vmax.f32 %v430, 0.0
        %v447 = vmax.f32 %v431, 0.0
        %v448 = vmax.f32 %v432, 0.0
        %v449 = vmax.f32 %v433, 0.0
        %v450 = vpack.c.bf16 %v435, %v434
        %v451 = vpack.c.bf16 %v437, %v436
        %v452 = vpack.c.bf16 %v439, %v438
        %v453 = vpack.c.bf16 %v441, %v440
        %v454 = vpack.c.bf16 %v443, %v442
        %v455 = vpack.c.bf16 %v445, %v444
        %v456 = vpack.c.bf16 %v447, %v446
        %v457 = vpack.c.bf16 %v449, %v448
        %v466 = vunpack.c.l.b16 %v298
        %v467 = vunpack.c.l.b16 %v299
        %v468 = vunpack.c.l.b16 %v300
        %v469 = vunpack.c.l.b16 %v301
        %v470 = vunpack.c.l.b16 %v302
        %v471 = vunpack.c.l.b16 %v303
        %v472 = vunpack.c.l.b16 %v304
        %v473 = vunpack.c.l.b16 %v305
        %v474 = vpack.c.b16 %v467, %v466
        %v475 = vpack.c.b16 %v469, %v468
        %v476 = vpack.c.b16 %v471, %v470
        %v477 = vpack.c.b16 %v473, %v472
        %vm482 = vcmask 523264
        %v484 = vsel %vm482, %v450, 0
        %v487 = vsel %vm482, %v451, 0
        %v490 = vsel %vm482, %v452, 0
        %v493 = vsel %vm482, %v453, 0
        %v496 = vsel %vm482, %v454, 0
        %v499 = vsel %vm482, %v455, 0
        %v502 = vsel %vm482, %v456, 0
        %v505 = vsel %vm482, %v457, 0
        %507 = vmatprep.subr.bf16.mxu0 0
        %508 = vmatpush1.bf16.msra.mxu0 0
        %509 = vmatprep.subr.bf16.mxu0 0
        %510 = vmatpush1.bf16.msra.mxu0 0
        %511 = vmatprep.subr.bf16.mxu0 0
        %512 = vmatpush1.bf16.msra.mxu0 0
        %513 = vmatprep.subr.bf16.mxu0 0
        %514 = vmatpush1.bf16.msra.mxu0 0
        %515 = vmatprep.subr.bf16.mxu0 0
        %516 = vmatpush1.bf16.msra.mxu0 %v477
        %517 = vmatprep.subr.bf16.mxu0 0
        %518 = vmatpush1.bf16.msra.mxu0 %v476
        %519 = vmatprep.subr.bf16.mxu0 0
        %520 = vmatpush1.bf16.msra.mxu0 %v475
        %521 = vmatprep.subr.bf16.mxu0 0
        %522 = vmatpush1.bf16.msra.mxu0 %v474
        %523 = vmatprep.subr.bf16.mxu0 0
        %524 = vmatpush2.bf16.msra.mxu0 0
        %525 = vmatprep.subr.bf16.mxu0 0
        %526 = vmatpush2.bf16.msra.mxu0 0
        %527 = vmatprep.subr.bf16.mxu0 0
        %528 = vmatpush2.bf16.msra.mxu0 0
        %529 = vmatprep.subr.bf16.mxu0 0
        %530 = vmatpush2.bf16.msra.mxu0 0
        %531 = vmatprep.subr.bf16.mxu0 0
        %532 = vmatpush2.bf16.msra.mxu0 0
        %533 = vmatprep.subr.bf16.mxu0 0
        %534 = vmatpush2.bf16.msra.mxu0 0
        %535 = vmatprep.subr.bf16.mxu0 0
        %536 = vmatpush2.bf16.msra.mxu0 0
        %537 = vmatprep.subr.bf16.mxu0 0
        %538 = vmatpush2.bf16.msra.mxu0 0
        %539 = vmatprep.mubr.bf16.mxu0 0
        %540 = vmatmul.mubr.bf16.gmra.mxu0 %v484
        %v541 = vpop.f32.mrf.mxu0
        %v542 = vadd.f32 0.0, %v541
        %v543 = vpop.f32.mrf.mxu0
        %v544 = vpop.f32.mrf.mxu0
        %v545 = vadd.f32 0.0, %v544
        %v546 = vpop.f32.mrf.mxu0
        %547 = vmatprep.mubr.bf16.mxu0 0
        %548 = vmatmul.mubr.bf16.gmra.mxu0 %v487
        %v549 = vpop.f32.mrf.mxu0
        %v550 = vadd.f32 0.0, %v549
        %v551 = vpop.f32.mrf.mxu0
        %v552 = vpop.f32.mrf.mxu0
        %v553 = vadd.f32 0.0, %v552
        %v554 = vpop.f32.mrf.mxu0
        %555 = vmatprep.mubr.bf16.mxu0 0
        %556 = vmatmul.mubr.bf16.gmra.mxu0 %v490
        %v557 = vpop.f32.mrf.mxu0
        %v558 = vadd.f32 0.0, %v557
        %v559 = vpop.f32.mrf.mxu0
        %v560 = vpop.f32.mrf.mxu0
        %v561 = vadd.f32 0.0, %v560
        %v562 = vpop.f32.mrf.mxu0
        %563 = vmatprep.mubr.bf16.mxu0 0
        %564 = vmatmul.mubr.bf16.gmra.mxu0 %v493
        %v565 = vpop.f32.mrf.mxu0
        %v566 = vadd.f32 0.0, %v565
        %v567 = vpop.f32.mrf.mxu0
        %v568 = vpop.f32.mrf.mxu0
        %v569 = vadd.f32 0.0, %v568
        %v570 = vpop.f32.mrf.mxu0
        %571 = vmatprep.mubr.bf16.mxu0 0
        %572 = vmatmul.mubr.bf16.gmra.mxu0 %v496
        %v573 = vpop.f32.mrf.mxu0
        %v574 = vadd.f32 0.0, %v573
        %v575 = vpop.f32.mrf.mxu0
        %v576 = vpop.f32.mrf.mxu0
        %v577 = vadd.f32 0.0, %v576
        %v578 = vpop.f32.mrf.mxu0
        %579 = vmatprep.mubr.bf16.mxu0 0
        %580 = vmatmul.mubr.bf16.gmra.mxu0 %v499
        %v581 = vpop.f32.mrf.mxu0
        %v582 = vadd.f32 0.0, %v581
        %v583 = vpop.f32.mrf.mxu0
        %v584 = vpop.f32.mrf.mxu0
        %v585 = vadd.f32 0.0, %v584
        %v586 = vpop.f32.mrf.mxu0
        %587 = vmatprep.mubr.bf16.mxu0 0
        %588 = vmatmul.mubr.bf16.gmra.mxu0 %v502
        %v589 = vpop.f32.mrf.mxu0
        %v590 = vadd.f32 0.0, %v589
        %v591 = vpop.f32.mrf.mxu0
        %v592 = vpop.f32.mrf.mxu0
        %v593 = vadd.f32 0.0, %v592
        %v594 = vpop.f32.mrf.mxu0
        %595 = vmatprep.mubr.bf16.mxu0 0
        %596 = vmatmul.mubr.bf16.gmra.mxu0 %v505
        %v597 = vpop.f32.mrf.mxu0
        %v598 = vadd.f32 0.0, %v597
        %v599 = vpop.f32.mrf.mxu0
        %v600 = vpop.f32.mrf.mxu0
        %v601 = vadd.f32 0.0, %v600
        %v602 = vpop.f32.mrf.mxu0
        %603 = vdwg.mxu0
        %v605 = vlaneseq
        %v606 = vshrl.u32 %v605, 7
        %v607 = vsub.s32 0, %v606
        %v608 = vrot.slane %v296, %v607
        %v610 = vmul.f32 %v542, %v608
        %v611 = vmul.f32 %v545, %v608
        %v612 = vmul.f32 %v550, %v608
        %v613 = vmul.f32 %v553, %v608
        %v614 = vmul.f32 %v558, %v608
        %v615 = vmul.f32 %v561, %v608
        %v616 = vmul.f32 %v566, %v608
        %v617 = vmul.f32 %v569, %v608
        %v618 = vmul.f32 %v574, %v608
        %v619 = vmul.f32 %v577, %v608
        %v620 = vmul.f32 %v582, %v608
        %v621 = vmul.f32 %v585, %v608
        %v622 = vmul.f32 %v590, %v608
        %v623 = vmul.f32 %v593, %v608
        %v624 = vmul.f32 %v598, %v608
        %v625 = vmul.f32 %v601, %v608
        %v627 = vlaneseq
        %v628 = vshrl.u32 %v627, 7
        %v629 = vsub.s32 0, %v628
        %v630 = vrot.slane %v297, %v629
        %v632 = vadd.f32 %v610, %v630
        %v633 = vadd.f32 %v611, %v630
        %v634 = vadd.f32 %v612, %v630
        %v635 = vadd.f32 %v613, %v630
        %v636 = vadd.f32 %v614, %v630
        %v637 = vadd.f32 %v615, %v630
        %v638 = vadd.f32 %v616, %v630
        %v639 = vadd.f32 %v617, %v630
        %v640 = vadd.f32 %v618, %v630
        %v641 = vadd.f32 %v619, %v630
        %v642 = vadd.f32 %v620, %v630
        %v643 = vadd.f32 %v621, %v630
        %v644 = vadd.f32 %v622, %v630
        %v645 = vadd.f32 %v623, %v630
        %v646 = vadd.f32 %v624, %v630
        %v647 = vadd.f32 %v625, %v630
        %v648 = vmax.f32 %v632, 0.0
        %v649 = vmax.f32 %v633, 0.0
        %v650 = vmax.f32 %v634, 0.0
        %v651 = vmax.f32 %v635, 0.0
        %v652 = vmax.f32 %v636, 0.0
        %v653 = vmax.f32 %v637, 0.0
        %v654 = vmax.f32 %v638, 0.0
        %v655 = vmax.f32 %v639, 0.0
        %v656 = vmax.f32 %v640, 0.0
        %v657 = vmax.f32 %v641, 0.0
        %v658 = vmax.f32 %v642, 0.0
        %v659 = vmax.f32 %v643, 0.0
        %v660 = vmax.f32 %v644, 0.0
        %v661 = vmax.f32 %v645, 0.0
        %v662 = vmax.f32 %v646, 0.0
        %v663 = vmax.f32 %v647, 0.0
        %v664 = vpack.c.bf16 %v649, %v648
        %v665 = vpack.c.bf16 %v651, %v650
        %v666 = vpack.c.bf16 %v653, %v652
        %v667 = vpack.c.bf16 %v655, %v654
        %v668 = vpack.c.bf16 %v657, %v656
        %v669 = vpack.c.bf16 %v659, %v658
        %v670 = vpack.c.bf16 %v661, %v660
        %v671 = vpack.c.bf16 %v663, %v662
        %v680 = vunpack.c.l.b16 %v664
        %v681 = vunpack.c.h.b16 %v664
        %v682 = vunpack.c.l.b16 %v665
        %v683 = vunpack.c.h.b16 %v665
        %v684 = vunpack.c.l.b16 %v666
        %v685 = vunpack.c.h.b16 %v666
        %v686 = vunpack.c.l.b16 %v667
        %v687 = vunpack.c.h.b16 %v667
        %v688 = vunpack.c.l.b16 %v668
        %v689 = vunpack.c.h.b16 %v668
        %v690 = vunpack.c.l.b16 %v669
        %v691 = vunpack.c.h.b16 %v669
        %v692 = vunpack.c.l.b16 %v670
        %v693 = vunpack.c.h.b16 %v670
        %v694 = vunpack.c.l.b16 %v671
        %v695 = vunpack.c.h.b16 %v671
        %v696 = vpack.c.b16 %v680, %v680
        %v697 = vpack.c.b16 %v681, %v681
        %v698 = vpack.c.b16 %v682, %v682
        %v699 = vpack.c.b16 %v683, %v683
        %v700 = vpack.c.b16 %v684, %v684
        %v701 = vpack.c.b16 %v685, %v685
        %v702 = vpack.c.b16 %v686, %v686
        %v703 = vpack.c.b16 %v687, %v687
        %v704 = vpack.c.b16 %v688, %v688
        %v705 = vpack.c.b16 %v689, %v689
        %v706 = vpack.c.b16 %v690, %v690
        %v707 = vpack.c.b16 %v691, %v691
        %v708 = vpack.c.b16 %v692, %v692
        %v709 = vpack.c.b16 %v693, %v693
        %v710 = vpack.c.b16 %v694, %v694
        %v711 = vpack.c.b16 %v695, %v695
        %vm712 = vsmask.f32 4368
        %vm713 = vmor %vm307, %vm712
        %v715 = vshrl.u32 %v696, 16
        %v717 = vrot.slane %v715, 7
        %v718 = vshll.u32 %v696, 16
        %v720 = vor.u32 %v717, %v718
        %v721 = vrot.slane %v717, 4
        %v723 = vshrl.u32 %v697, 16
        %v725 = vrot.slane %v723, 7
        %v726 = vshll.u32 %v697, 16
        %v728 = vor.u32 %v725, %v726
        %v729 = vsel %vm713, %v721, %v728
        %v731 = vshrl.u32 %v698, 16
        %v733 = vrot.slane %v731, 7
        %v734 = vshll.u32 %v698, 16
        %v736 = vor.u32 %v733, %v734
        %v737 = vrot.slane %v733, 4
        %v739 = vshrl.u32 %v699, 16
        %v741 = vrot.slane %v739, 7
        %v742 = vshll.u32 %v699, 16
        %v744 = vor.u32 %v741, %v742
        %v745 = vsel %vm713, %v737, %v744
        %v747 = vshrl.u32 %v700, 16
        %v749 = vrot.slane %v747, 7
        %v750 = vshll.u32 %v700, 16
        %v752 = vor.u32 %v749, %v750
        %v753 = vrot.slane %v749, 4
        %v755 = vshrl.u32 %v701, 16
        %v757 = vrot.slane %v755, 7
        %v758 = vshll.u32 %v701, 16
        %v760 = vor.u32 %v757, %v758
        %v761 = vsel %vm713, %v753, %v760
        %v763 = vshrl.u32 %v702, 16
        %v765 = vrot.slane %v763, 7
        %v766 = vshll.u32 %v702, 16
        %v768 = vor.u32 %v765, %v766
        %v769 = vrot.slane %v765, 4
        %v771 = vshrl.u32 %v703, 16
        %v773 = vrot.slane %v771, 7
        %v774 = vshll.u32 %v703, 16
        %v776 = vor.u32 %v773, %v774
        %v777 = vsel %vm713, %v769, %v776
        %v779 = vshrl.u32 %v704, 16
        %v781 = vrot.slane %v779, 7
        %v782 = vshll.u32 %v704, 16
        %v784 = vor.u32 %v781, %v782
        %v785 = vrot.slane %v781, 4
        %v787 = vshrl.u32 %v705, 16
        %v789 = vrot.slane %v787, 7
        %v790 = vshll.u32 %v705, 16
        %v792 = vor.u32 %v789, %v790
        %v793 = vsel %vm713, %v785, %v792
        %v795 = vshrl.u32 %v706, 16
        %v797 = vrot.slane %v795, 7
        %v798 = vshll.u32 %v706, 16
        %v800 = vor.u32 %v797, %v798
        %v801 = vrot.slane %v797, 4
        %v803 = vshrl.u32 %v707, 16
        %v805 = vrot.slane %v803, 7
        %v806 = vshll.u32 %v707, 16
        %v808 = vor.u32 %v805, %v806
        %v809 = vsel %vm713, %v801, %v808
        %v811 = vshrl.u32 %v708, 16
        %v813 = vrot.slane %v811, 7
        %v814 = vshll.u32 %v708, 16
        %v816 = vor.u32 %v813, %v814
        %v817 = vrot.slane %v813, 4
        %v819 = vshrl.u32 %v709, 16
        %v821 = vrot.slane %v819, 7
        %v822 = vshll.u32 %v709, 16
        %v824 = vor.u32 %v821, %v822
        %v825 = vsel %vm713, %v817, %v824
        %v827 = vshrl.u32 %v710, 16
        %v829 = vrot.slane %v827, 7
        %v830 = vshll.u32 %v710, 16
        %v832 = vor.u32 %v829, %v830
        %v833 = vrot.slane %v829, 4
        %v835 = vshrl.u32 %v711, 16
        %v837 = vrot.slane %v835, 7
        %v838 = vshll.u32 %v711, 16
        %v840 = vor.u32 %v837, %v838
        %v841 = vsel %vm713, %v833, %v840
        %s858 = scalar_lea.vmem [#allocation2], 24
        %vm859 = vcmask 1043456
        %vm860 = vsmask.f32 7938
        %vm861 = vmand %vm859, %vm860
        %v862 = vld [vmem:[%s858] sm:$0xf]
        %v863 = vsel %vm861, %v720, %v862
        %864 = vst [vmem:[%s858] sm:$0xf] %v863
        %865 = vst [vmem:[%s858 + $0xc] sm:$0xf] %v729
        %v866 = vld [vmem:[%s858 + $0x18] sm:$0xf]
        %v867 = vsel %vm861, %v736, %v866
        %868 = vst [vmem:[%s858 + $0x18] sm:$0xf] %v867
        %869 = vst [vmem:[%s858 + $0x24] sm:$0xf] %v745
        %v870 = vld [vmem:[%s858 + $0x30] sm:$0xf]
        %v871 = vsel %vm861, %v752, %v870
        %872 = vst [vmem:[%s858 + $0x30] sm:$0xf] %v871
        %873 = vst [vmem:[%s858 + $0x3c] sm:$0xf] %v761
        %v874 = vld [vmem:[%s858 + $0x48] sm:$0xf]
        %v875 = vsel %vm861, %v768, %v874
        %876 = vst [vmem:[%s858 + $0x48] sm:$0xf] %v875
        %877 = vst [vmem:[%s858 + $0x54] sm:$0xf] %v777
        %v878 = vld [vmem:[%s858 + $0x60] sm:$0xf]
        %v879 = vsel %vm861, %v784, %v878
        %880 = vst [vmem:[%s858 + $0x60] sm:$0xf] %v879
        %881 = vst [vmem:[%s858 + $0x6c] sm:$0xf] %v793
        %v882 = vld [vmem:[%s858 + $0x78] sm:$0xf]
        %v883 = vsel %vm861, %v800, %v882
        %884 = vst [vmem:[%s858 + $0x78] sm:$0xf] %v883
        %885 = vst [vmem:[%s858 + $0x84] sm:$0xf] %v809
        %v886 = vld [vmem:[%s858 + $0x90] sm:$0xf]
        %v887 = vsel %vm861, %v816, %v886
        %888 = vst [vmem:[%s858 + $0x90] sm:$0xf] %v887
        %889 = vst [vmem:[%s858 + $0x9c] sm:$0xf] %v825
        %v890 = vld [vmem:[%s858 + $0xa8] sm:$0xf]
        %v891 = vsel %vm861, %v832, %v890
        %892 = vst [vmem:[%s858 + $0xa8] sm:$0xf] %v891
        %893 = vst [vmem:[%s858 + $0xb4] sm:$0xf] %v841
        %910 = vst [vmem:[%s858 + $0x4] sm:$0xf] %v696
        %911 = vst [vmem:[%s858 + $0x10] sm:$0xf] %v697
        %912 = vst [vmem:[%s858 + $0x1c] sm:$0xf] %v698
        %913 = vst [vmem:[%s858 + $0x28] sm:$0xf] %v699
        %914 = vst [vmem:[%s858 + $0x34] sm:$0xf] %v700
        %915 = vst [vmem:[%s858 + $0x40] sm:$0xf] %v701
        %916 = vst [vmem:[%s858 + $0x4c] sm:$0xf] %v702
        %917 = vst [vmem:[%s858 + $0x58] sm:$0xf] %v703
        %918 = vst [vmem:[%s858 + $0x64] sm:$0xf] %v704
        %919 = vst [vmem:[%s858 + $0x70] sm:$0xf] %v705
        %920 = vst [vmem:[%s858 + $0x7c] sm:$0xf] %v706
        %921 = vst [vmem:[%s858 + $0x88] sm:$0xf] %v707
        %922 = vst [vmem:[%s858 + $0x94] sm:$0xf] %v708
        %923 = vst [vmem:[%s858 + $0xa0] sm:$0xf] %v709
        %924 = vst [vmem:[%s858 + $0xac] sm:$0xf] %v710
        %925 = vst [vmem:[%s858 + $0xb8] sm:$0xf] %v711
        %vm926 = vsmask.f32 3328
        %vm927 = vsmask.f32 7440
        %vm928 = vmor %vm926, %vm927
        %v929 = vrot.slane %v715, 4
        %v930 = vrot.slane %v718, 5
        %v931 = vor.u32 %v929, %v930
        %v932 = vrot.slane %v931, 4
        %v933 = vrot.slane %v726, 5
        %v934 = vsel %vm928, %v932, %v933
        %v935 = vrot.slane %v723, 4
        %v936 = vor.u32 %v935, %v933
        %v937 = vrot.slane %v936, 4
        %v938 = vrot.slane %v731, 4
        %v939 = vrot.slane %v734, 5
        %v940 = vor.u32 %v938, %v939
        %v941 = vrot.slane %v940, 4
        %v942 = vrot.slane %v742, 5
        %v943 = vsel %vm928, %v941, %v942
        %v944 = vrot.slane %v739, 4
        %v945 = vor.u32 %v944, %v942
        %v946 = vrot.slane %v945, 4
        %v947 = vrot.slane %v747, 4
        %v948 = vrot.slane %v750, 5
        %v949 = vor.u32 %v947, %v948
        %v950 = vrot.slane %v949, 4
        %v951 = vrot.slane %v758, 5
        %v952 = vsel %vm928, %v950, %v951
        %v953 = vrot.slane %v755, 4
        %v954 = vor.u32 %v953, %v951
        %v955 = vrot.slane %v954, 4
        %v956 = vrot.slane %v763, 4
        %v957 = vrot.slane %v766, 5
        %v958 = vor.u32 %v956, %v957
        %v959 = vrot.slane %v958, 4
        %v960 = vrot.slane %v774, 5
        %v961 = vsel %vm928, %v959, %v960
        %v962 = vrot.slane %v771, 4
        %v963 = vor.u32 %v962, %v960
        %v964 = vrot.slane %v963, 4
        %v965 = vrot.slane %v779, 4
        %v966 = vrot.slane %v782, 5
        %v967 = vor.u32 %v965, %v966
        %v968 = vrot.slane %v967, 4
        %v969 = vrot.slane %v790, 5
        %v970 = vsel %vm928, %v968, %v969
        %v971 = vrot.slane %v787, 4
        %v972 = vor.u32 %v971, %v969
        %v973 = vrot.slane %v972, 4
        %v974 = vrot.slane %v795, 4
        %v975 = vrot.slane %v798, 5
        %v976 = vor.u32 %v974, %v975
        %v977 = vrot.slane %v976, 4
        %v978 = vrot.slane %v806, 5
        %v979 = vsel %vm928, %v977, %v978
        %v980 = vrot.slane %v803, 4
        %v981 = vor.u32 %v980, %v978
        %v982 = vrot.slane %v981, 4
        %v983 = vrot.slane %v811, 4
        %v984 = vrot.slane %v814, 5
        %v985 = vor.u32 %v983, %v984
        %v986 = vrot.slane %v985, 4
        %v987 = vrot.slane %v822, 5
        %v988 = vsel %vm928, %v986, %v987
        %v989 = vrot.slane %v819, 4
        %v990 = vor.u32 %v989, %v987
        %v991 = vrot.slane %v990, 4
        %v992 = vrot.slane %v827, 4
        %v993 = vrot.slane %v830, 5
        %v994 = vor.u32 %v992, %v993
        %v995 = vrot.slane %v994, 4
        %v996 = vrot.slane %v838, 5
        %v997 = vsel %vm928, %v995, %v996
        %v998 = vrot.slane %v835, 4
        %v999 = vor.u32 %v998, %v996
        %v1000 = vrot.slane %v999, 4
        %1017 = vst [vmem:[%s858 + $0x8] sm:$0xf] %v934
        %vm1018 = vmand %vm859, %vm926
        %v1019 = vld [vmem:[%s858 + $0x14] sm:$0xf]
        %v1020 = vsel %vm1018, %v937, %v1019
        %1021 = vst [vmem:[%s858 + $0x14] sm:$0xf] %v1020
        %1022 = vst [vmem:[%s858 + $0x20] sm:$0xf] %v943
        %v1023 = vld [vmem:[%s858 + $0x2c] sm:$0xf]
        %v1024 = vsel %vm1018, %v946, %v1023
        %1025 = vst [vmem:[%s858 + $0x2c] sm:$0xf] %v1024
        %1026 = vst [vmem:[%s858 + $0x38] sm:$0xf] %v952
        %v1027 = vld [vmem:[%s858 + $0x44] sm:$0xf]
        %v1028 = vsel %vm1018, %v955, %v1027
        %1029 = vst [vmem:[%s858 + $0x44] sm:$0xf] %v1028
        %1030 = vst [vmem:[%s858 + $0x50] sm:$0xf] %v961
        %v1031 = vld [vmem:[%s858 + $0x5c] sm:$0xf]
        %v1032 = vsel %vm1018, %v964, %v1031
        %1033 = vst [vmem:[%s858 + $0x5c] sm:$0xf] %v1032
        %1034 = vst [vmem:[%s858 + $0x68] sm:$0xf] %v970
        %v1035 = vld [vmem:[%s858 + $0x74] sm:$0xf]
        %v1036 = vsel %vm1018, %v973, %v1035
        %1037 = vst [vmem:[%s858 + $0x74] sm:$0xf] %v1036
        %1038 = vst [vmem:[%s858 + $0x80] sm:$0xf] %v979
        %v1039 = vld [vmem:[%s858 + $0x8c] sm:$0xf]
        %v1040 = vsel %vm1018, %v982, %v1039
        %1041 = vst [vmem:[%s858 + $0x8c] sm:$0xf] %v1040
        %1042 = vst [vmem:[%s858 + $0x98] sm:$0xf] %v988
        %v1043 = vld [vmem:[%s858 + $0xa4] sm:$0xf]
        %v1044 = vsel %vm1018, %v991, %v1043
        %1045 = vst [vmem:[%s858 + $0xa4] sm:$0xf] %v1044
        %1046 = vst [vmem:[%s858 + $0xb0] sm:$0xf] %v997
        %v1047 = vld [vmem:[%s858 + $0xbc] sm:$0xf]
        %v1048 = vsel %vm1018, %v1000, %v1047
        %1049 = vst [vmem:[%s858 + $0xbc] sm:$0xf] %v1048
        %p1050 = scmp.eq.s32.totalorder %s26, 0
        // Predicated region
        $region49: #{bottleneck_forward_nchw.1} parent=47 // pred_check
          %p1051 = pneg %p1050
        $region50: #{bottleneck_forward_nchw.1} parent=47 // pred_check_branch
          %1053 = sbr.rel (%p1051) target = $region52
        $region51: #{bottleneck_forward_nchw.1} parent=47 // pred_region
          %1054 = vst [vmem:[#allocation2] sm:$0xff] 0
          %1055 = vst [vmem:[#allocation2 + $0x8] sm:$0xf] 0
          %1056 = vst [vmem:[#allocation2 + $0xc] sm:$0xff] 0
          %1057 = vst [vmem:[#allocation2 + $0x14] sm:$0xf] 0
        $region52: #{bottleneck_forward_nchw.1} parent=47 // pred_fallthru
          _
        %p1058 = scmp.gt.s32.totalorder %s26, 0
        // Predicated region
        $region53: #{bottleneck_forward_nchw.1} parent=47 // pred_check
          %p1059 = pneg %p1058
        $region54: #{bottleneck_forward_nchw.1} parent=47 // pred_check_branch
          %1061 = sbr.rel (%p1059) target = $region56
        $region55: #{bottleneck_forward_nchw.1} parent=47 // pred_region
          %s1062 = ssub.s32 %s293, 1
          %s1063 = smul.u32 %s1062, 16
          %s1064 = scalar_lea.vmem %s290, %s1063
          %v1065 = vld [vmem:[%s1064] sm:$0xff]
          %v1066 = vld [vmem:[%s1064 + $0x8] sm:$0xff]
          %v1067 = vmul.f32 %v1065, %v394
          %v1068 = vmul.f32 %v1066, %v394
          %v1069 = vadd.f32 %v1067, %v416
          %v1070 = vadd.f32 %v1068, %v416
          %v1071 = vmax.f32 %v1069, 0.0
          %v1072 = vmax.f32 %v1070, 0.0
          %v1073 = vpack.c.bf16 %v1072, %v1071
          %v1075 = vsel %vm482, %v1073, 0
          %1077 = vmatprep.subr.bf16.mxu0 0
          %1078 = vmatpush1.bf16.msra.mxu0 0
          %1079 = vmatprep.subr.bf16.mxu0 0
          %1080 = vmatpush1.bf16.msra.mxu0 0
          %1081 = vmatprep.subr.bf16.mxu0 0
          %1082 = vmatpush1.bf16.msra.mxu0 0
          %1083 = vmatprep.subr.bf16.mxu0 0
          %1084 = vmatpush1.bf16.msra.mxu0 0
          %1085 = vmatprep.subr.bf16.mxu0 0
          %1086 = vmatpush1.bf16.msra.mxu0 %v477
          %1087 = vmatprep.subr.bf16.mxu0 0
          %1088 = vmatpush1.bf16.msra.mxu0 %v476
          %1089 = vmatprep.subr.bf16.mxu0 0
          %1090 = vmatpush1.bf16.msra.mxu0 %v475
          %1091 = vmatprep.subr.bf16.mxu0 0
          %1092 = vmatpush1.bf16.msra.mxu0 %v474
          %1093 = vmatprep.subr.bf16.mxu0 0
          %1094 = vmatpush2.bf16.msra.mxu0 0
          %1095 = vmatprep.subr.bf16.mxu0 0
          %1096 = vmatpush2.bf16.msra.mxu0 0
          %1097 = vmatprep.subr.bf16.mxu0 0
          %1098 = vmatpush2.bf16.msra.mxu0 0
          %1099 = vmatprep.subr.bf16.mxu0 0
          %1100 = vmatpush2.bf16.msra.mxu0 0
          %1101 = vmatprep.subr.bf16.mxu0 0
          %1102 = vmatpush2.bf16.msra.mxu0 0
          %1103 = vmatprep.subr.bf16.mxu0 0
          %1104 = vmatpush2.bf16.msra.mxu0 0
          %1105 = vmatprep.subr.bf16.mxu0 0
          %1106 = vmatpush2.bf16.msra.mxu0 0
          %1107 = vmatprep.subr.bf16.mxu0 0
          %1108 = vmatpush2.bf16.msra.mxu0 0
          %1109 = vmatprep.mubr.bf16.mxu0 0
          %1110 = vmatmul.mubr.bf16.gmra.mxu0 %v1075
          %v1111 = vpop.f32.mrf.mxu0
          %v1112 = vadd.f32 0.0, %v1111
          %v1113 = vpop.f32.mrf.mxu0
          %v1114 = vpop.f32.mrf.mxu0
          %v1115 = vadd.f32 0.0, %v1114
          %v1116 = vpop.f32.mrf.mxu0
          %1117 = vdwg.mxu0
          %v1118 = vmul.f32 %v1112, %v608
          %v1119 = vmul.f32 %v1115, %v608
          %v1120 = vadd.f32 %v1118, %v630
          %v1121 = vadd.f32 %v1119, %v630
          %v1122 = vmax.f32 %v1120, 0.0
          %v1123 = vmax.f32 %v1121, 0.0
          %v1124 = vpack.c.bf16 %v1123, %v1122
          %v1126 = vunpack.c.l.b16 %v1124
          %v1127 = vunpack.c.h.b16 %v1124
          %v1128 = vpack.c.b16 %v1126, %v1126
          %v1129 = vpack.c.b16 %v1127, %v1127
          %v1131 = vshrl.u32 %v1128, 16
          %v1133 = vrot.slane %v1131, 7
          %v1134 = vshll.u32 %v1128, 16
          %v1136 = vor.u32 %v1133, %v1134
          %v1137 = vrot.slane %v1133, 4
          %v1139 = vshrl.u32 %v1129, 16
          %v1141 = vrot.slane %v1139, 7
          %v1142 = vshll.u32 %v1129, 16
          %v1144 = vor.u32 %v1141, %v1142
          %v1145 = vsel %vm713, %v1137, %v1144
          %v1148 = vld [vmem:[#allocation2] sm:$0xf]
          %v1149 = vsel %vm861, %v1136, %v1148
          %1150 = vst [vmem:[#allocation2] sm:$0xf] %v1149
          %1151 = vst [vmem:[#allocation2 + $0xc] sm:$0xf] %v1145
          %1154 = vst [vmem:[#allocation2 + $0x4] sm:$0xf] %v1128
          %1155 = vst [vmem:[#allocation2 + $0x10] sm:$0xf] %v1129
          %v1156 = vrot.slane %v1131, 4
          %v1157 = vrot.slane %v1134, 5
          %v1158 = vor.u32 %v1156, %v1157
          %v1159 = vrot.slane %v1158, 4
          %v1160 = vrot.slane %v1142, 5
          %v1161 = vsel %vm928, %v1159, %v1160
          %v1162 = vrot.slane %v1139, 4
          %v1163 = vor.u32 %v1162, %v1160
          %v1164 = vrot.slane %v1163, 4
          %1167 = vst [vmem:[#allocation2 + $0x8] sm:$0xf] %v1161
          %v1168 = vld [vmem:[#allocation2 + $0x14] sm:$0xf]
          %v1169 = vsel %vm1018, %v1164, %v1168
          %1170 = vst [vmem:[#allocation2 + $0x14] sm:$0xf] %v1169
        $region56: #{bottleneck_forward_nchw.1} parent=47 // pred_fallthru
          _
        %p1171 = scmp.eq.s32.totalorder %s26, 1
        // Predicated region
        $region57: #{bottleneck_forward_nchw.1} parent=47 // pred_check
          %p1172 = pneg %p1171
        $region58: #{bottleneck_forward_nchw.1} parent=47 // pred_check_branch
          %1174 = sbr.rel (%p1172) target = $region60
        $region59: #{bottleneck_forward_nchw.1} parent=47 // pred_region
          %s1175 = scalar_lea.vmem [#allocation2], 216
          %1176 = vst [vmem:[%s1175] sm:$0xff] 0
          %1177 = vst [vmem:[%s1175 + $0x8] sm:$0xf] 0
          %1178 = vst [vmem:[%s1175 + $0xc] sm:$0xff] 0
          %1179 = vst [vmem:[%s1175 + $0x14] sm:$0xf] 0
        $region60: #{bottleneck_forward_nchw.1} parent=47 // pred_fallthru
          _
        %p1180 = scmp.lt.s32.totalorder %s26, 1
        // Predicated region
        $region61: #{bottleneck_forward_nchw.1} parent=47 // pred_check
          %p1181 = pneg %p1180
        $region62: #{bottleneck_forward_nchw.1} parent=47 // pred_check_branch
          %1183 = sbr.rel (%p1181) target = $region64
        $region63: #{bottleneck_forward_nchw.1} parent=47 // pred_region
          %s1184 = sadd.s32 %s293, 8
          %s1185 = smul.u32 %s1184, 16
          %s1186 = scalar_lea.vmem %s290, %s1185
          %v1187 = vld [vmem:[%s1186] sm:$0xff]
          %v1188 = vld [vmem:[%s1186 + $0x8] sm:$0xff]
          %v1189 = vmul.f32 %v1187, %v394
          %v1190 = vmul.f32 %v1188, %v394
          %v1191 = vadd.f32 %v1189, %v416
          %v1192 = vadd.f32 %v1190, %v416
          %v1193 = vmax.f32 %v1191, 0.0
          %v1194 = vmax.f32 %v1192, 0.0
          %v1195 = vpack.c.bf16 %v1194, %v1193
          %v1197 = vsel %vm482, %v1195, 0
          %1199 = vmatprep.subr.bf16.mxu0 0
          %1200 = vmatpush1.bf16.msra.mxu0 0
          %1201 = vmatprep.subr.bf16.mxu0 0
          %1202 = vmatpush1.bf16.msra.mxu0 0
          %1203 = vmatprep.subr.bf16.mxu0 0
          %1204 = vmatpush1.bf16.msra.mxu0 0
          %1205 = vmatprep.subr.bf16.mxu0 0
          %1206 = vmatpush1.bf16.msra.mxu0 0
          %1207 = vmatprep.subr.bf16.mxu0 0
          %1208 = vmatpush1.bf16.msra.mxu0 %v477
          %1209 = vmatprep.subr.bf16.mxu0 0
          %1210 = vmatpush1.bf16.msra.mxu0 %v476
          %1211 = vmatprep.subr.bf16.mxu0 0
          %1212 = vmatpush1.bf16.msra.mxu0 %v475
          %1213 = vmatprep.subr.bf16.mxu0 0
          %1214 = vmatpush1.bf16.msra.mxu0 %v474
          %1215 = vmatprep.subr.bf16.mxu0 0
          %1216 = vmatpush2.bf16.msra.mxu0 0
          %1217 = vmatprep.subr.bf16.mxu0 0
          %1218 = vmatpush2.bf16.msra.mxu0 0
          %1219 = vmatprep.subr.bf16.mxu0 0
          %1220 = vmatpush2.bf16.msra.mxu0 0
          %1221 = vmatprep.subr.bf16.mxu0 0
          %1222 = vmatpush2.bf16.msra.mxu0 0
          %1223 = vmatprep.subr.bf16.mxu0 0
          %1224 = vmatpush2.bf16.msra.mxu0 0
          %1225 = vmatprep.subr.bf16.mxu0 0
          %1226 = vmatpush2.bf16.msra.mxu0 0
          %1227 = vmatprep.subr.bf16.mxu0 0
          %1228 = vmatpush2.bf16.msra.mxu0 0
          %1229 = vmatprep.subr.bf16.mxu0 0
          %1230 = vmatpush2.bf16.msra.mxu0 0
          %1231 = vmatprep.mubr.bf16.mxu0 0
          %1232 = vmatmul.mubr.bf16.gmra.mxu0 %v1197
          %v1233 = vpop.f32.mrf.mxu0
          %v1234 = vadd.f32 0.0, %v1233
          %v1235 = vpop.f32.mrf.mxu0
          %v1236 = vpop.f32.mrf.mxu0
          %v1237 = vadd.f32 0.0, %v1236
          %v1238 = vpop.f32.mrf.mxu0
          %1239 = vdwg.mxu0
          %v1240 = vmul.f32 %v1234, %v608
          %v1241 = vmul.f32 %v1237, %v608
          %v1242 = vadd.f32 %v1240, %v630
          %v1243 = vadd.f32 %v1241, %v630
          %v1244 = vmax.f32 %v1242, 0.0
          %v1245 = vmax.f32 %v1243, 0.0
          %v1246 = vpack.c.bf16 %v1245, %v1244
          %v1248 = vunpack.c.l.b16 %v1246
          %v1249 = vunpack.c.h.b16 %v1246
          %v1250 = vpack.c.b16 %v1248, %v1248
          %v1251 = vpack.c.b16 %v1249, %v1249
          %v1253 = vshrl.u32 %v1250, 16
          %v1255 = vrot.slane %v1253, 7
          %v1256 = vshll.u32 %v1250, 16
          %v1258 = vor.u32 %v1255, %v1256
          %v1259 = vrot.slane %v1255, 4
          %v1261 = vshrl.u32 %v1251, 16
          %v1263 = vrot.slane %v1261, 7
          %v1264 = vshll.u32 %v1251, 16
          %v1266 = vor.u32 %v1263, %v1264
          %v1267 = vsel %vm713, %v1259, %v1266
          %s1270 = scalar_lea.vmem [#allocation2], 216
          %v1271 = vld [vmem:[%s1270] sm:$0xf]
          %v1272 = vsel %vm861, %v1258, %v1271
          %1273 = vst [vmem:[%s1270] sm:$0xf] %v1272
          %1274 = vst [vmem:[%s1270 + $0xc] sm:$0xf] %v1267
          %1277 = vst [vmem:[%s1270 + $0x4] sm:$0xf] %v1250
          %1278 = vst [vmem:[%s1270 + $0x10] sm:$0xf] %v1251
          %v1279 = vrot.slane %v1253, 4
          %v1280 = vrot.slane %v1256, 5
          %v1281 = vor.u32 %v1279, %v1280
          %v1282 = vrot.slane %v1281, 4
          %v1283 = vrot.slane %v1264, 5
          %v1284 = vsel %vm928, %v1282, %v1283
          %v1285 = vrot.slane %v1261, 4
          %v1286 = vor.u32 %v1285, %v1283
          %v1287 = vrot.slane %v1286, 4
          %1290 = vst [vmem:[%s1270 + $0x8] sm:$0xf] %v1284
          %v1291 = vld [vmem:[%s1270 + $0x14] sm:$0xf]
          %v1292 = vsel %vm1018, %v1287, %v1291
          %1293 = vst [vmem:[%s1270 + $0x14] sm:$0xf] %v1292
        $region64: #{bottleneck_forward_nchw.1} parent=47 // pred_fallthru
          _
        %v1294 = vld [vmem:[#allocation2] sm:$0xff]
        %v1295 = vld [vmem:[#allocation2 + $0x8] sm:$0xf]
        %v1296 = vld [vmem:[#allocation2 + $0xc] sm:$0xff]
        %v1297 = vld [vmem:[#allocation2 + $0x14] sm:$0xf]
        %v1298 = vld [vmem:[#allocation2 + $0x18] sm:$0xff]
        %v1299 = vld [vmem:[#allocation2 + $0x20] sm:$0xf]
        %v1300 = vld [vmem:[#allocation2 + $0x24] sm:$0xff]
        %v1301 = vld [vmem:[#allocation2 + $0x2c] sm:$0xf]
        %v1302 = vld [vmem:[#allocation2 + $0x30] sm:$0xff]
        %v1303 = vld [vmem:[#allocation2 + $0x38] sm:$0xf]
        %v1304 = vld [vmem:[#allocation2 + $0x3c] sm:$0xff]
        %v1305 = vld [vmem:[#allocation2 + $0x44] sm:$0xf]
        %v1306 = vld [vmem:[#allocation2 + $0x48] sm:$0xff]
        %v1307 = vld [vmem:[#allocation2 + $0x50] sm:$0xf]
        %v1308 = vld [vmem:[#allocation2 + $0x54] sm:$0xff]
        %v1309 = vld [vmem:[#allocation2 + $0x5c] sm:$0xf]
        %v1310 = vld [vmem:[#allocation2 + $0x60] sm:$0xff]
        %v1311 = vld [vmem:[#allocation2 + $0x68] sm:$0xf]
        %v1312 = vld [vmem:[#allocation2 + $0x6c] sm:$0xff]
        %v1313 = vld [vmem:[#allocation2 + $0x74] sm:$0xf]
        %v1314 = vld [vmem:[#allocation2 + $0x78] sm:$0xff]
        %v1315 = vld [vmem:[#allocation2 + $0x80] sm:$0xf]
        %v1316 = vld [vmem:[#allocation2 + $0x84] sm:$0xff]
        %v1317 = vld [vmem:[#allocation2 + $0x8c] sm:$0xf]
        %v1318 = vld [vmem:[#allocation2 + $0x90] sm:$0xff]
        %v1319 = vld [vmem:[#allocation2 + $0x98] sm:$0xf]
        %v1320 = vld [vmem:[#allocation2 + $0x9c] sm:$0xff]
        %v1321 = vld [vmem:[#allocation2 + $0xa4] sm:$0xf]
        %v1322 = vld [vmem:[#allocation2 + $0xa8] sm:$0xff]
        %v1323 = vld [vmem:[#allocation2 + $0xb0] sm:$0xf]
        %v1324 = vld [vmem:[#allocation2 + $0xb4] sm:$0xff]
        %v1325 = vld [vmem:[#allocation2 + $0xbc] sm:$0xf]
        %v1326 = vld [vmem:[%s6] sm:$0xf]
        %v1327 = vld [vmem:[%s6 + $0x4] sm:$0xf]
        %v1328 = vld [vmem:[%s6 + $0x8] sm:$0xf]
        %v1329 = vld [vmem:[%s6 + $0xc] sm:$0xf]
        %v1330 = vld [vmem:[%s6 + $0x10] sm:$0xf]
        %v1331 = vld [vmem:[%s6 + $0x14] sm:$0xf]
        %v1332 = vld [vmem:[%s6 + $0x18] sm:$0xf]
        %v1333 = vld [vmem:[%s6 + $0x1c] sm:$0xf]
        %v1334 = vld [vmem:[%s6 + $0x20] sm:$0xf]
        %v1335 = vld [vmem:[%s6 + $0x24] sm:$0xf]
        %v1336 = vld [vmem:[%s6 + $0x28] sm:$0xf]
        %v1337 = vld [vmem:[%s6 + $0x2c] sm:$0xf]
        %v1338 = vld [vmem:[%s6 + $0x30] sm:$0xf]
        %v1339 = vld [vmem:[%s6 + $0x34] sm:$0xf]
        %v1340 = vld [vmem:[%s6 + $0x38] sm:$0xf]
        %v1341 = vld [vmem:[%s6 + $0x3c] sm:$0xf]
        %v1342 = vld [vmem:[%s6 + $0x40] sm:$0xf]
        %v1343 = vld [vmem:[%s6 + $0x44] sm:$0xf]
        %v1344 = vld [vmem:[%s6 + $0x48] sm:$0xf]
        %v1345 = vld [vmem:[%s6 + $0x4c] sm:$0xf]
        %v1346 = vld [vmem:[%s6 + $0x50] sm:$0xf]
        %v1347 = vld [vmem:[%s6 + $0x54] sm:$0xf]
        %v1348 = vld [vmem:[%s6 + $0x58] sm:$0xf]
        %v1349 = vld [vmem:[%s6 + $0x5c] sm:$0xf]
        %v1350 = vld [vmem:[%s6 + $0x60] sm:$0xf]
        %v1351 = vld [vmem:[%s6 + $0x64] sm:$0xf]
        %v1352 = vld [vmem:[%s6 + $0x68] sm:$0xf]
        %v1353 = vld [vmem:[%s6 + $0x6c] sm:$0xf]
        %v1354 = vld [vmem:[%s6 + $0x70] sm:$0xf]
        %v1355 = vld [vmem:[%s6 + $0x74] sm:$0xf]
        %v1356 = vld [vmem:[%s6 + $0x78] sm:$0xf]
        %v1357 = vld [vmem:[%s6 + $0x7c] sm:$0xf]
        %v1358 = vld [vmem:[%s6 + $0x80] sm:$0xf]
        %v1359 = vld [vmem:[%s6 + $0x84] sm:$0xf]
        %v1360 = vld [vmem:[%s6 + $0x88] sm:$0xf]
        %v1361 = vld [vmem:[%s6 + $0x8c] sm:$0xf]
        %v1362 = vld [vmem:[%s6 + $0x90] sm:$0xf]
        %v1363 = vld [vmem:[%s6 + $0x94] sm:$0xf]
        %v1364 = vld [vmem:[%s6 + $0x98] sm:$0xf]
        %v1365 = vld [vmem:[%s6 + $0x9c] sm:$0xf]
        %v1366 = vld [vmem:[%s6 + $0xa0] sm:$0xf]
        %v1367 = vld [vmem:[%s6 + $0xa4] sm:$0xf]
        %v1368 = vld [vmem:[%s6 + $0xa8] sm:$0xf]
        %v1369 = vld [vmem:[%s6 + $0xac] sm:$0xf]
        %v1370 = vld [vmem:[%s6 + $0xb0] sm:$0xf]
        %v1371 = vld [vmem:[%s6 + $0xb4] sm:$0xf]
        %v1372 = vld [vmem:[%s6 + $0xb8] sm:$0xf]
        %v1373 = vld [vmem:[%s6 + $0xbc] sm:$0xf]
        %v1374 = vld [vmem:[%s858] sm:$0xff]
        %v1375 = vld [vmem:[%s858 + $0x8] sm:$0xf]
        %v1376 = vld [vmem:[%s858 + $0xc] sm:$0xff]
        %v1377 = vld [vmem:[%s858 + $0x14] sm:$0xf]
        %v1378 = vld [vmem:[%s858 + $0x18] sm:$0xff]
        %v1379 = vld [vmem:[%s858 + $0x20] sm:$0xf]
        %v1380 = vld [vmem:[%s858 + $0x24] sm:$0xff]
        %v1381 = vld [vmem:[%s858 + $0x2c] sm:$0xf]
        %v1382 = vld [vmem:[%s858 + $0x30] sm:$0xff]
        %v1383 = vld [vmem:[%s858 + $0x38] sm:$0xf]
        %v1384 = vld [vmem:[%s858 + $0x3c] sm:$0xff]
        %v1385 = vld [vmem:[%s858 + $0x44] sm:$0xf]
        %v1386 = vld [vmem:[%s858 + $0x48] sm:$0xff]
        %v1387 = vld [vmem:[%s858 + $0x50] sm:$0xf]
        %v1388 = vld [vmem:[%s858 + $0x54] sm:$0xff]
        %v1389 = vld [vmem:[%s858 + $0x5c] sm:$0xf]
        %v1390 = vld [vmem:[%s858 + $0x60] sm:$0xff]
        %v1391 = vld [vmem:[%s858 + $0x68] sm:$0xf]
        %v1392 = vld [vmem:[%s858 + $0x6c] sm:$0xff]
        %v1393 = vld [vmem:[%s858 + $0x74] sm:$0xf]
        %v1394 = vld [vmem:[%s858 + $0x78] sm:$0xff]
        %v1395 = vld [vmem:[%s858 + $0x80] sm:$0xf]
        %v1396 = vld [vmem:[%s858 + $0x84] sm:$0xff]
        %v1397 = vld [vmem:[%s858 + $0x8c] sm:$0xf]
        %v1398 = vld [vmem:[%s858 + $0x90] sm:$0xff]
        %v1399 = vld [vmem:[%s858 + $0x98] sm:$0xf]
        %v1400 = vld [vmem:[%s858 + $0x9c] sm:$0xff]
        %v1401 = vld [vmem:[%s858 + $0xa4] sm:$0xf]
        %v1402 = vld [vmem:[%s858 + $0xa8] sm:$0xff]
        %v1403 = vld [vmem:[%s858 + $0xb0] sm:$0xf]
        %v1404 = vld [vmem:[%s858 + $0xb4] sm:$0xff]
        %v1405 = vld [vmem:[%s858 + $0xbc] sm:$0xf]
        %s1406 = scalar_lea.vmem %s6, 192
        %v1407 = vld [vmem:[%s1406] sm:$0xf]
        %v1408 = vld [vmem:[%s1406 + $0x4] sm:$0xf]
        %v1409 = vld [vmem:[%s1406 + $0x8] sm:$0xf]
        %v1410 = vld [vmem:[%s1406 + $0xc] sm:$0xf]
        %v1411 = vld [vmem:[%s1406 + $0x10] sm:$0xf]
        %v1412 = vld [vmem:[%s1406 + $0x14] sm:$0xf]
        %v1413 = vld [vmem:[%s1406 + $0x18] sm:$0xf]
        %v1414 = vld [vmem:[%s1406 + $0x1c] sm:$0xf]
        %v1415 = vld [vmem:[%s1406 + $0x20] sm:$0xf]
        %v1416 = vld [vmem:[%s1406 + $0x24] sm:$0xf]
        %v1417 = vld [vmem:[%s1406 + $0x28] sm:$0xf]
        %v1418 = vld [vmem:[%s1406 + $0x2c] sm:$0xf]
        %v1419 = vld [vmem:[%s1406 + $0x30] sm:$0xf]
        %v1420 = vld [vmem:[%s1406 + $0x34] sm:$0xf]
        %v1421 = vld [vmem:[%s1406 + $0x38] sm:$0xf]
        %v1422 = vld [vmem:[%s1406 + $0x3c] sm:$0xf]
        %v1423 = vld [vmem:[%s1406 + $0x40] sm:$0xf]
        %v1424 = vld [vmem:[%s1406 + $0x44] sm:$0xf]
        %v1425 = vld [vmem:[%s1406 + $0x48] sm:$0xf]
        %v1426 = vld [vmem:[%s1406 + $0x4c] sm:$0xf]
        %v1427 = vld [vmem:[%s1406 + $0x50] sm:$0xf]
        %v1428 = vld [vmem:[%s1406 + $0x54] sm:$0xf]
        %v1429 = vld [vmem:[%s1406 + $0x58] sm:$0xf]
        %v1430 = vld [vmem:[%s1406 + $0x5c] sm:$0xf]
        %v1431 = vld [vmem:[%s1406 + $0x60] sm:$0xf]
        %v1432 = vld [vmem:[%s1406 + $0x64] sm:$0xf]
        %v1433 = vld [vmem:[%s1406 + $0x68] sm:$0xf]
        %v1434 = vld [vmem:[%s1406 + $0x6c] sm:$0xf]
        %v1435 = vld [vmem:[%s1406 + $0x70] sm:$0xf]
        %v1436 = vld [vmem:[%s1406 + $0x74] sm:$0xf]
        %v1437 = vld [vmem:[%s1406 + $0x78] sm:$0xf]
        %v1438 = vld [vmem:[%s1406 + $0x7c] sm:$0xf]
        %v1439 = vld [vmem:[%s1406 + $0x80] sm:$0xf]
        %v1440 = vld [vmem:[%s1406 + $0x84] sm:$0xf]
        %v1441 = vld [vmem:[%s1406 + $0x88] sm:$0xf]
        %v1442 = vld [vmem:[%s1406 + $0x8c] sm:$0xf]
        %v1443 = vld [vmem:[%s1406 + $0x90] sm:$0xf]
        %v1444 = vld [vmem:[%s1406 + $0x94] sm:$0xf]
        %v1445 = vld [vmem:[%s1406 + $0x98] sm:$0xf]
        %v1446 = vld [vmem:[%s1406 + $0x9c] sm:$0xf]
        %v1447 = vld [vmem:[%s1406 + $0xa0] sm:$0xf]
        %v1448 = vld [vmem:[%s1406 + $0xa4] sm:$0xf]
        %v1449 = vld [vmem:[%s1406 + $0xa8] sm:$0xf]
        %v1450 = vld [vmem:[%s1406 + $0xac] sm:$0xf]
        %v1451 = vld [vmem:[%s1406 + $0xb0] sm:$0xf]
        %v1452 = vld [vmem:[%s1406 + $0xb4] sm:$0xf]
        %v1453 = vld [vmem:[%s1406 + $0xb8] sm:$0xf]
        %v1454 = vld [vmem:[%s1406 + $0xbc] sm:$0xf]
        %v1487 = vunpack.c.l.b16 %v1374
        %v1488 = vunpack.c.h.b16 %v1374
        %v1489 = vunpack.c.l.b16 %v1375
        %v1490 = vunpack.c.l.b16 %v1376
        %v1491 = vunpack.c.h.b16 %v1376
        %v1492 = vunpack.c.l.b16 %v1377
        %v1493 = vunpack.c.l.b16 %v1378
        %v1494 = vunpack.c.h.b16 %v1378
        %v1495 = vunpack.c.l.b16 %v1379
        %v1496 = vunpack.c.l.b16 %v1380
        %v1497 = vunpack.c.h.b16 %v1380
        %v1498 = vunpack.c.l.b16 %v1381
        %v1499 = vunpack.c.l.b16 %v1382
        %v1500 = vunpack.c.h.b16 %v1382
        %v1501 = vunpack.c.l.b16 %v1383
        %v1502 = vunpack.c.l.b16 %v1384
        %v1503 = vunpack.c.h.b16 %v1384
        %v1504 = vunpack.c.l.b16 %v1385
        %v1505 = vunpack.c.l.b16 %v1386
        %v1506 = vunpack.c.h.b16 %v1386
        %v1507 = vunpack.c.l.b16 %v1387
        %v1508 = vunpack.c.l.b16 %v1388
        %v1509 = vunpack.c.h.b16 %v1388
        %v1510 = vunpack.c.l.b16 %v1389
        %v1511 = vunpack.c.l.b16 %v1390
        %v1512 = vunpack.c.h.b16 %v1390
        %v1513 = vunpack.c.l.b16 %v1391
        %v1514 = vunpack.c.l.b16 %v1392
        %v1515 = vunpack.c.h.b16 %v1392
        %v1516 = vunpack.c.l.b16 %v1393
        %v1517 = vunpack.c.l.b16 %v1394
        %v1518 = vunpack.c.h.b16 %v1394
        %v1519 = vunpack.c.l.b16 %v1395
        %v1520 = vunpack.c.l.b16 %v1396
        %v1521 = vunpack.c.h.b16 %v1396
        %v1522 = vunpack.c.l.b16 %v1397
        %v1523 = vunpack.c.l.b16 %v1398
        %v1524 = vunpack.c.h.b16 %v1398
        %v1525 = vunpack.c.l.b16 %v1399
        %v1526 = vunpack.c.l.b16 %v1400
        %v1527 = vunpack.c.h.b16 %v1400
        %v1528 = vunpack.c.l.b16 %v1401
        %v1529 = vunpack.c.l.b16 %v1402
        %v1530 = vunpack.c.h.b16 %v1402
        %v1531 = vunpack.c.l.b16 %v1403
        %v1532 = vunpack.c.l.b16 %v1404
        %v1533 = vunpack.c.h.b16 %v1404
        %v1534 = vunpack.c.l.b16 %v1405
        %v1535 = vpack.c.b16 %v1490, %v1487
        %v1536 = vpack.c.b16 %v1491, %v1488
        %v1537 = vpack.c.b16 %v1492, %v1489
        %v1538 = vpack.c.b16 %v1496, %v1493
        %v1539 = vpack.c.b16 %v1497, %v1494
        %v1540 = vpack.c.b16 %v1498, %v1495
        %v1541 = vpack.c.b16 %v1502, %v1499
        %v1542 = vpack.c.b16 %v1503, %v1500
        %v1543 = vpack.c.b16 %v1504, %v1501
        %v1544 = vpack.c.b16 %v1508, %v1505
        %v1545 = vpack.c.b16 %v1509, %v1506
        %v1546 = vpack.c.b16 %v1510, %v1507
        %v1547 = vpack.c.b16 %v1514, %v1511
        %v1548 = vpack.c.b16 %v1515, %v1512
        %v1549 = vpack.c.b16 %v1516, %v1513
        %v1550 = vpack.c.b16 %v1520, %v1517
        %v1551 = vpack.c.b16 %v1521, %v1518
        %v1552 = vpack.c.b16 %v1522, %v1519
        %v1553 = vpack.c.b16 %v1526, %v1523
        %v1554 = vpack.c.b16 %v1527, %v1524
        %v1555 = vpack.c.b16 %v1528, %v1525
        %v1556 = vpack.c.b16 %v1532, %v1529
        %v1557 = vpack.c.b16 %v1533, %v1530
        %v1558 = vpack.c.b16 %v1534, %v1531
        %v1631 = vunpack.c.l.b16 %v1407
        %v1632 = vunpack.c.l.b16 %v1408
        %v1633 = vunpack.c.l.b16 %v1409
        %v1634 = vunpack.c.l.b16 %v1410
        %v1635 = vunpack.c.l.b16 %v1411
        %v1636 = vunpack.c.l.b16 %v1412
        %v1637 = vunpack.c.l.b16 %v1413
        %v1638 = vunpack.c.l.b16 %v1414
        %v1639 = vunpack.c.l.b16 %v1415
        %v1640 = vunpack.c.l.b16 %v1416
        %v1641 = vunpack.c.l.b16 %v1417
        %v1642 = vunpack.c.l.b16 %v1418
        %v1643 = vunpack.c.l.b16 %v1419
        %v1644 = vunpack.c.l.b16 %v1420
        %v1645 = vunpack.c.l.b16 %v1421
        %v1646 = vunpack.c.l.b16 %v1422
        %v1647 = vunpack.c.l.b16 %v1423
        %v1648 = vunpack.c.l.b16 %v1424
        %v1649 = vunpack.c.l.b16 %v1425
        %v1650 = vunpack.c.l.b16 %v1426
        %v1651 = vunpack.c.l.b16 %v1427
        %v1652 = vunpack.c.l.b16 %v1428
        %v1653 = vunpack.c.l.b16 %v1429
        %v1654 = vunpack.c.l.b16 %v1430
        %v1655 = vunpack.c.l.b16 %v1431
        %v1656 = vunpack.c.l.b16 %v1432
        %v1657 = vunpack.c.l.b16 %v1433
        %v1658 = vunpack.c.l.b16 %v1434
        %v1659 = vunpack.c.l.b16 %v1435
        %v1660 = vunpack.c.l.b16 %v1436
        %v1661 = vunpack.c.l.b16 %v1437
        %v1662 = vunpack.c.l.b16 %v1438
        %v1663 = vunpack.c.l.b16 %v1439
        %v1664 = vunpack.c.l.b16 %v1440
        %v1665 = vunpack.c.l.b16 %v1441
        %v1666 = vunpack.c.l.b16 %v1442
        %v1667 = vunpack.c.l.b16 %v1443
        %v1668 = vunpack.c.l.b16 %v1444
        %v1669 = vunpack.c.l.b16 %v1445
        %v1670 = vunpack.c.l.b16 %v1446
        %v1671 = vunpack.c.l.b16 %v1447
        %v1672 = vunpack.c.l.b16 %v1448
        %v1673 = vunpack.c.l.b16 %v1449
        %v1674 = vunpack.c.l.b16 %v1450
        %v1675 = vunpack.c.l.b16 %v1451
        %v1676 = vunpack.c.l.b16 %v1452
        %v1677 = vunpack.c.l.b16 %v1453
        %v1678 = vunpack.c.l.b16 %v1454
        %v1679 = vpack.c.b16 %v1632, %v1631
        %v1680 = vpack.c.b16 %v1634, %v1633
        %v1681 = vpack.c.b16 %v1636, %v1635
        %v1682 = vpack.c.b16 %v1638, %v1637
        %v1683 = vpack.c.b16 %v1640, %v1639
        %v1684 = vpack.c.b16 %v1642, %v1641
        %v1685 = vpack.c.b16 %v1644, %v1643
        %v1686 = vpack.c.b16 %v1646, %v1645
        %v1687 = vpack.c.b16 %v1648, %v1647
        %v1688 = vpack.c.b16 %v1650, %v1649
        %v1689 = vpack.c.b16 %v1652, %v1651
        %v1690 = vpack.c.b16 %v1654, %v1653
        %v1691 = vpack.c.b16 %v1656, %v1655
        %v1692 = vpack.c.b16 %v1658, %v1657
        %v1693 = vpack.c.b16 %v1660, %v1659
        %v1694 = vpack.c.b16 %v1662, %v1661
        %v1695 = vpack.c.b16 %v1664, %v1663
        %v1696 = vpack.c.b16 %v1666, %v1665
        %v1697 = vpack.c.b16 %v1668, %v1667
        %v1698 = vpack.c.b16 %v1670, %v1669
        %v1699 = vpack.c.b16 %v1672, %v1671
        %v1700 = vpack.c.b16 %v1674, %v1673
        %v1701 = vpack.c.b16 %v1676, %v1675
        %v1702 = vpack.c.b16 %v1678, %v1677
        %1727 = vmatprep.subr.bf16.mxu0 0
        %1728 = vmatpush1.bf16.msra.mxu0 %v1686
        %1729 = vmatprep.subr.bf16.mxu0 0
        %1730 = vmatpush1.bf16.msra.mxu0 %v1685
        %1731 = vmatprep.subr.bf16.mxu0 0
        %1732 = vmatpush1.bf16.msra.mxu0 %v1684
        %1733 = vmatprep.subr.bf16.mxu0 0
        %1734 = vmatpush1.bf16.msra.mxu0 %v1683
        %1735 = vmatprep.subr.bf16.mxu0 0
        %1736 = vmatpush1.bf16.msra.mxu0 %v1682
        %1737 = vmatprep.subr.bf16.mxu0 0
        %1738 = vmatpush1.bf16.msra.mxu0 %v1681
        %1739 = vmatprep.subr.bf16.mxu0 0
        %1740 = vmatpush1.bf16.msra.mxu0 %v1680
        %1741 = vmatprep.subr.bf16.mxu0 0
        %1742 = vmatpush1.bf16.msra.mxu0 %v1679
        %1743 = vmatprep.subr.bf16.mxu0 0
        %1744 = vmatpush2.bf16.msra.mxu0 %v1694
        %1745 = vmatprep.subr.bf16.mxu0 0
        %1746 = vmatpush2.bf16.msra.mxu0 %v1693
        %1747 = vmatprep.subr.bf16.mxu0 0
        %1748 = vmatpush2.bf16.msra.mxu0 %v1692
        %1749 = vmatprep.subr.bf16.mxu0 0
        %1750 = vmatpush2.bf16.msra.mxu0 %v1691
        %1751 = vmatprep.subr.bf16.mxu0 0
        %1752 = vmatpush2.bf16.msra.mxu0 %v1690
        %1753 = vmatprep.subr.bf16.mxu0 0
        %1754 = vmatpush2.bf16.msra.mxu0 %v1689
        %1755 = vmatprep.subr.bf16.mxu0 0
        %1756 = vmatpush2.bf16.msra.mxu0 %v1688
        %1757 = vmatprep.subr.bf16.mxu0 0
        %1758 = vmatpush2.bf16.msra.mxu0 %v1687
        %1759 = vmatprep.mubr.bf16.mxu0 %v1536
        %1760 = vmatmul.mubr.bf16.gmra.mxu0 %v1535
        %v1761 = vpop.f32.mrf.mxu0
        %v1762 = vadd.f32 0.0, %v1761
        %v1763 = vpop.f32.mrf.mxu0
        %v1764 = vpop.f32.mrf.mxu0
        %v1765 = vadd.f32 0.0, %v1764
        %v1766 = vpop.f32.mrf.mxu0
        %1767 = vmatprep.mubr.bf16.mxu0 %v1539
        %1768 = vmatmul.mubr.bf16.gmra.mxu0 %v1538
        %v1769 = vpop.f32.mrf.mxu0
        %v1770 = vadd.f32 0.0, %v1769
        %v1771 = vpop.f32.mrf.mxu0
        %v1772 = vpop.f32.mrf.mxu0
        %v1773 = vadd.f32 0.0, %v1772
        %v1774 = vpop.f32.mrf.mxu0
        %1775 = vmatprep.mubr.bf16.mxu0 %v1542
        %1776 = vmatmul.mubr.bf16.gmra.mxu0 %v1541
        %v1777 = vpop.f32.mrf.mxu0
        %v1778 = vadd.f32 0.0, %v1777
        %v1779 = vpop.f32.mrf.mxu0
        %v1780 = vpop.f32.mrf.mxu0
        %v1781 = vadd.f32 0.0, %v1780
        %v1782 = vpop.f32.mrf.mxu0
        %1783 = vmatprep.mubr.bf16.mxu0 %v1545
        %1784 = vmatmul.mubr.bf16.gmra.mxu0 %v1544
        %v1785 = vpop.f32.mrf.mxu0
        %v1786 = vadd.f32 0.0, %v1785
        %v1787 = vpop.f32.mrf.mxu0
        %v1788 = vpop.f32.mrf.mxu0
        %v1789 = vadd.f32 0.0, %v1788
        %v1790 = vpop.f32.mrf.mxu0
        %1791 = vmatprep.mubr.bf16.mxu0 %v1548
        %1792 = vmatmul.mubr.bf16.gmra.mxu0 %v1547
        %v1793 = vpop.f32.mrf.mxu0
        %v1794 = vadd.f32 0.0, %v1793
        %v1795 = vpop.f32.mrf.mxu0
        %v1796 = vpop.f32.mrf.mxu0
        %v1797 = vadd.f32 0.0, %v1796
        %v1798 = vpop.f32.mrf.mxu0
        %1799 = vmatprep.mubr.bf16.mxu0 %v1551
        %1800 = vmatmul.mubr.bf16.gmra.mxu0 %v1550
        %v1801 = vpop.f32.mrf.mxu0
        %v1802 = vadd.f32 0.0, %v1801
        %v1803 = vpop.f32.mrf.mxu0
        %v1804 = vpop.f32.mrf.mxu0
        %v1805 = vadd.f32 0.0, %v1804
        %v1806 = vpop.f32.mrf.mxu0
        %1807 = vmatprep.mubr.bf16.mxu0 %v1554
        %1808 = vmatmul.mubr.bf16.gmra.mxu0 %v1553
        %v1809 = vpop.f32.mrf.mxu0
        %v1810 = vadd.f32 0.0, %v1809
        %v1811 = vpop.f32.mrf.mxu0
        %v1812 = vpop.f32.mrf.mxu0
        %v1813 = vadd.f32 0.0, %v1812
        %v1814 = vpop.f32.mrf.mxu0
        %1815 = vmatprep.mubr.bf16.mxu0 %v1557
        %1816 = vmatmul.mubr.bf16.gmra.mxu0 %v1556
        %v1817 = vpop.f32.mrf.mxu0
        %v1818 = vadd.f32 0.0, %v1817
        %v1819 = vpop.f32.mrf.mxu0
        %v1820 = vpop.f32.mrf.mxu0
        %v1821 = vadd.f32 0.0, %v1820
        %v1822 = vpop.f32.mrf.mxu0
        %1823 = vdwg.mxu0
        %1824 = vmatprep.subr.bf16.mxu0 0
        %1825 = vmatpush1.bf16.msra.mxu0 %v1702
        %1826 = vmatprep.subr.bf16.mxu0 0
        %1827 = vmatpush1.bf16.msra.mxu0 %v1701
        %1828 = vmatprep.subr.bf16.mxu0 0
        %1829 = vmatpush1.bf16.msra.mxu0 %v1700
        %1830 = vmatprep.subr.bf16.mxu0 0
        %1831 = vmatpush1.bf16.msra.mxu0 %v1699
        %1832 = vmatprep.subr.bf16.mxu0 0
        %1833 = vmatpush1.bf16.msra.mxu0 %v1698
        %1834 = vmatprep.subr.bf16.mxu0 0
        %1835 = vmatpush1.bf16.msra.mxu0 %v1697
        %1836 = vmatprep.subr.bf16.mxu0 0
        %1837 = vmatpush1.bf16.msra.mxu0 %v1696
        %1838 = vmatprep.subr.bf16.mxu0 0
        %1839 = vmatpush1.bf16.msra.mxu0 %v1695
        %1840 = vmatprep.subr.bf16.mxu0 0
        %1841 = vmatpush2.bf16.msra.mxu0 0
        %1842 = vmatprep.subr.bf16.mxu0 0
        %1843 = vmatpush2.bf16.msra.mxu0 0
        %1844 = vmatprep.subr.bf16.mxu0 0
        %1845 = vmatpush2.bf16.msra.mxu0 0
        %1846 = vmatprep.subr.bf16.mxu0 0
        %1847 = vmatpush2.bf16.msra.mxu0 0
        %1848 = vmatprep.subr.bf16.mxu0 0
        %1849 = vmatpush2.bf16.msra.mxu0 0
        %1850 = vmatprep.subr.bf16.mxu0 0
        %1851 = vmatpush2.bf16.msra.mxu0 0
        %1852 = vmatprep.subr.bf16.mxu0 0
        %1853 = vmatpush2.bf16.msra.mxu0 0
        %1854 = vmatprep.subr.bf16.mxu0 0
        %1855 = vmatpush2.bf16.msra.mxu0 0
        %1856 = vmatprep.mubr.bf16.mxu0 0
        %1857 = vmatmul.mubr.bf16.gmra.mxu0 %v1537
        %v1858 = vpop.f32.mrf.mxu0
        %v1859 = vadd.f32 %v1762, %v1858
        %v1860 = vpop.f32.mrf.mxu0
        %v1861 = vpop.f32.mrf.mxu0
        %v1862 = vadd.f32 %v1765, %v1861
        %v1863 = vpop.f32.mrf.mxu0
        %1864 = vmatprep.mubr.bf16.mxu0 0
        %1865 = vmatmul.mubr.bf16.gmra.mxu0 %v1540
        %v1866 = vpop.f32.mrf.mxu0
        %v1867 = vadd.f32 %v1770, %v1866
        %v1868 = vpop.f32.mrf.mxu0
        %v1869 = vpop.f32.mrf.mxu0
        %v1870 = vadd.f32 %v1773, %v1869
        %v1871 = vpop.f32.mrf.mxu0
        %1872 = vmatprep.mubr.bf16.mxu0 0
        %1873 = vmatmul.mubr.bf16.gmra.mxu0 %v1543
        %v1874 = vpop.f32.mrf.mxu0
        %v1875 = vadd.f32 %v1778, %v1874
        %v1876 = vpop.f32.mrf.mxu0
        %v1877 = vpop.f32.mrf.mxu0
        %v1878 = vadd.f32 %v1781, %v1877
        %v1879 = vpop.f32.mrf.mxu0
        %1880 = vmatprep.mubr.bf16.mxu0 0
        %1881 = vmatmul.mubr.bf16.gmra.mxu0 %v1546
        %v1882 = vpop.f32.mrf.mxu0
        %v1883 = vadd.f32 %v1786, %v1882
        %v1884 = vpop.f32.mrf.mxu0
        %v1885 = vpop.f32.mrf.mxu0
        %v1886 = vadd.f32 %v1789, %v1885
        %v1887 = vpop.f32.mrf.mxu0
        %1888 = vmatprep.mubr.bf16.mxu0 0
        %1889 = vmatmul.mubr.bf16.gmra.mxu0 %v1549
        %v1890 = vpop.f32.mrf.mxu0
        %v1891 = vadd.f32 %v1794, %v1890
        %v1892 = vpop.f32.mrf.mxu0
        %v1893 = vpop.f32.mrf.mxu0
        %v1894 = vadd.f32 %v1797, %v1893
        %v1895 = vpop.f32.mrf.mxu0
        %1896 = vmatprep.mubr.bf16.mxu0 0
        %1897 = vmatmul.mubr.bf16.gmra.mxu0 %v1552
        %v1898 = vpop.f32.mrf.mxu0
        %v1899 = vadd.f32 %v1802, %v1898
        %v1900 = vpop.f32.mrf.mxu0
        %v1901 = vpop.f32.mrf.mxu0
        %v1902 = vadd.f32 %v1805, %v1901
        %v1903 = vpop.f32.mrf.mxu0
        %1904 = vmatprep.mubr.bf16.mxu0 0
        %1905 = vmatmul.mubr.bf16.gmra.mxu0 %v1555
        %v1906 = vpop.f32.mrf.mxu0
        %v1907 = vadd.f32 %v1810, %v1906
        %v1908 = vpop.f32.mrf.mxu0
        %v1909 = vpop.f32.mrf.mxu0
        %v1910 = vadd.f32 %v1813, %v1909
        %v1911 = vpop.f32.mrf.mxu0
        %1912 = vmatprep.mubr.bf16.mxu0 0
        %1913 = vmatmul.mubr.bf16.gmra.mxu0 %v1558
        %v1914 = vpop.f32.mrf.mxu0
        %v1915 = vadd.f32 %v1818, %v1914
        %v1916 = vpop.f32.mrf.mxu0
        %v1917 = vpop.f32.mrf.mxu0
        %v1918 = vadd.f32 %v1821, %v1917
        %v1919 = vpop.f32.mrf.mxu0
        %1920 = vdwg.mxu0
        %v1953 = vunpack.c.l.b16 %v1294
        %v1954 = vunpack.c.h.b16 %v1294
        %v1955 = vunpack.c.l.b16 %v1295
        %v1956 = vunpack.c.l.b16 %v1296
        %v1957 = vunpack.c.h.b16 %v1296
        %v1958 = vunpack.c.l.b16 %v1297
        %v1959 = vunpack.c.l.b16 %v1298
        %v1960 = vunpack.c.h.b16 %v1298
        %v1961 = vunpack.c.l.b16 %v1299
        %v1962 = vunpack.c.l.b16 %v1300
        %v1963 = vunpack.c.h.b16 %v1300
        %v1964 = vunpack.c.l.b16 %v1301
        %v1965 = vunpack.c.l.b16 %v1302
        %v1966 = vunpack.c.h.b16 %v1302
        %v1967 = vunpack.c.l.b16 %v1303
        %v1968 = vunpack.c.l.b16 %v1304
        %v1969 = vunpack.c.h.b16 %v1304
        %v1970 = vunpack.c.l.b16 %v1305
        %v1971 = vunpack.c.l.b16 %v1306
        %v1972 = vunpack.c.h.b16 %v1306
        %v1973 = vunpack.c.l.b16 %v1307
        %v1974 = vunpack.c.l.b16 %v1308
        %v1975 = vunpack.c.h.b16 %v1308
        %v1976 = vunpack.c.l.b16 %v1309
        %v1977 = vunpack.c.l.b16 %v1310
        %v1978 = vunpack.c.h.b16 %v1310
        %v1979 = vunpack.c.l.b16 %v1311
        %v1980 = vunpack.c.l.b16 %v1312
        %v1981 = vunpack.c.h.b16 %v1312
        %v1982 = vunpack.c.l.b16 %v1313
        %v1983 = vunpack.c.l.b16 %v1314
        %v1984 = vunpack.c.h.b16 %v1314
        %v1985 = vunpack.c.l.b16 %v1315
        %v1986 = vunpack.c.l.b16 %v1316
        %v1987 = vunpack.c.h.b16 %v1316
        %v1988 = vunpack.c.l.b16 %v1317
        %v1989 = vunpack.c.l.b16 %v1318
        %v1990 = vunpack.c.h.b16 %v1318
        %v1991 = vunpack.c.l.b16 %v1319
        %v1992 = vunpack.c.l.b16 %v1320
        %v1993 = vunpack.c.h.b16 %v1320
        %v1994 = vunpack.c.l.b16 %v1321
        %v1995 = vunpack.c.l.b16 %v1322
        %v1996 = vunpack.c.h.b16 %v1322
        %v1997 = vunpack.c.l.b16 %v1323
        %v1998 = vunpack.c.l.b16 %v1324
        %v1999 = vunpack.c.h.b16 %v1324
        %v2000 = vunpack.c.l.b16 %v1325
        %v2001 = vpack.c.b16 %v1956, %v1953
        %v2002 = vpack.c.b16 %v1957, %v1954
        %v2003 = vpack.c.b16 %v1958, %v1955
        %v2004 = vpack.c.b16 %v1962, %v1959
        %v2005 = vpack.c.b16 %v1963, %v1960
        %v2006 = vpack.c.b16 %v1964, %v1961
        %v2007 = vpack.c.b16 %v1968, %v1965
        %v2008 = vpack.c.b16 %v1969, %v1966
        %v2009 = vpack.c.b16 %v1970, %v1967
        %v2010 = vpack.c.b16 %v1974, %v1971
        %v2011 = vpack.c.b16 %v1975, %v1972
        %v2012 = vpack.c.b16 %v1976, %v1973
        %v2013 = vpack.c.b16 %v1980, %v1977
        %v2014 = vpack.c.b16 %v1981, %v1978
        %v2015 = vpack.c.b16 %v1982, %v1979
        %v2016 = vpack.c.b16 %v1986, %v1983
        %v2017 = vpack.c.b16 %v1987, %v1984
        %v2018 = vpack.c.b16 %v1988, %v1985
        %v2019 = vpack.c.b16 %v1992, %v1989
        %v2020 = vpack.c.b16 %v1993, %v1990
        %v2021 = vpack.c.b16 %v1994, %v1991
        %v2022 = vpack.c.b16 %v1998, %v1995
        %v2023 = vpack.c.b16 %v1999, %v1996
        %v2024 = vpack.c.b16 %v2000, %v1997
        %v2097 = vunpack.c.l.b16 %v1326
        %v2098 = vunpack.c.l.b16 %v1327
        %v2099 = vunpack.c.l.b16 %v1328
        %v2100 = vunpack.c.l.b16 %v1329
        %v2101 = vunpack.c.l.b16 %v1330
        %v2102 = vunpack.c.l.b16 %v1331
        %v2103 = vunpack.c.l.b16 %v1332
        %v2104 = vunpack.c.l.b16 %v1333
        %v2105 = vunpack.c.l.b16 %v1334
        %v2106 = vunpack.c.l.b16 %v1335
        %v2107 = vunpack.c.l.b16 %v1336
        %v2108 = vunpack.c.l.b16 %v1337
        %v2109 = vunpack.c.l.b16 %v1338
        %v2110 = vunpack.c.l.b16 %v1339
        %v2111 = vunpack.c.l.b16 %v1340
        %v2112 = vunpack.c.l.b16 %v1341
        %v2113 = vunpack.c.l.b16 %v1342
        %v2114 = vunpack.c.l.b16 %v1343
        %v2115 = vunpack.c.l.b16 %v1344
        %v2116 = vunpack.c.l.b16 %v1345
        %v2117 = vunpack.c.l.b16 %v1346
        %v2118 = vunpack.c.l.b16 %v1347
        %v2119 = vunpack.c.l.b16 %v1348
        %v2120 = vunpack.c.l.b16 %v1349
        %v2121 = vunpack.c.l.b16 %v1350
        %v2122 = vunpack.c.l.b16 %v1351
        %v2123 = vunpack.c.l.b16 %v1352
        %v2124 = vunpack.c.l.b16 %v1353
        %v2125 = vunpack.c.l.b16 %v1354
        %v2126 = vunpack.c.l.b16 %v1355
        %v2127 = vunpack.c.l.b16 %v1356
        %v2128 = vunpack.c.l.b16 %v1357
        %v2129 = vunpack.c.l.b16 %v1358
        %v2130 = vunpack.c.l.b16 %v1359
        %v2131 = vunpack.c.l.b16 %v1360
        %v2132 = vunpack.c.l.b16 %v1361
        %v2133 = vunpack.c.l.b16 %v1362
        %v2134 = vunpack.c.l.b16 %v1363
        %v2135 = vunpack.c.l.b16 %v1364
        %v2136 = vunpack.c.l.b16 %v1365
        %v2137 = vunpack.c.l.b16 %v1366
        %v2138 = vunpack.c.l.b16 %v1367
        %v2139 = vunpack.c.l.b16 %v1368
        %v2140 = vunpack.c.l.b16 %v1369
        %v2141 = vunpack.c.l.b16 %v1370
        %v2142 = vunpack.c.l.b16 %v1371
        %v2143 = vunpack.c.l.b16 %v1372
        %v2144 = vunpack.c.l.b16 %v1373
        %v2145 = vpack.c.b16 %v2098, %v2097
        %v2146 = vpack.c.b16 %v2100, %v2099
        %v2147 = vpack.c.b16 %v2102, %v2101
        %v2148 = vpack.c.b16 %v2104, %v2103
        %v2149 = vpack.c.b16 %v2106, %v2105
        %v2150 = vpack.c.b16 %v2108, %v2107
        %v2151 = vpack.c.b16 %v2110, %v2109
        %v2152 = vpack.c.b16 %v2112, %v2111
        %v2153 = vpack.c.b16 %v2114, %v2113
        %v2154 = vpack.c.b16 %v2116, %v2115
        %v2155 = vpack.c.b16 %v2118, %v2117
        %v2156 = vpack.c.b16 %v2120, %v2119
        %v2157 = vpack.c.b16 %v2122, %v2121
        %v2158 = vpack.c.b16 %v2124, %v2123
        %v2159 = vpack.c.b16 %v2126, %v2125
        %v2160 = vpack.c.b16 %v2128, %v2127
        %v2161 = vpack.c.b16 %v2130, %v2129
        %v2162 = vpack.c.b16 %v2132, %v2131
        %v2163 = vpack.c.b16 %v2134, %v2133
        %v2164 = vpack.c.b16 %v2136, %v2135
        %v2165 = vpack.c.b16 %v2138, %v2137
        %v2166 = vpack.c.b16 %v2140, %v2139
        %v2167 = vpack.c.b16 %v2142, %v2141
        %v2168 = vpack.c.b16 %v2144, %v2143
        %2193 = vmatprep.subr.bf16.mxu0 0
        %2194 = vmatpush1.bf16.msra.mxu0 %v2152
        %2195 = vmatprep.subr.bf16.mxu0 0
        %2196 = vmatpush1.bf16.msra.mxu0 %v2151
        %2197 = vmatprep.subr.bf16.mxu0 0
        %2198 = vmatpush1.bf16.msra.mxu0 %v2150
        %2199 = vmatprep.subr.bf16.mxu0 0
        %2200 = vmatpush1.bf16.msra.mxu0 %v2149
        %2201 = vmatprep.subr.bf16.mxu0 0
        %2202 = vmatpush1.bf16.msra.mxu0 %v2148
        %2203 = vmatprep.subr.bf16.mxu0 0
        %2204 = vmatpush1.bf16.msra.mxu0 %v2147
        %2205 = vmatprep.subr.bf16.mxu0 0
        %2206 = vmatpush1.bf16.msra.mxu0 %v2146
        %2207 = vmatprep.subr.bf16.mxu0 0
        %2208 = vmatpush1.bf16.msra.mxu0 %v2145
        %2209 = vmatprep.subr.bf16.mxu0 0
        %2210 = vmatpush2.bf16.msra.mxu0 %v2160
        %2211 = vmatprep.subr.bf16.mxu0 0
        %2212 = vmatpush2.bf16.msra.mxu0 %v2159
        %2213 = vmatprep.subr.bf16.mxu0 0
        %2214 = vmatpush2.bf16.msra.mxu0 %v2158
        %2215 = vmatprep.subr.bf16.mxu0 0
        %2216 = vmatpush2.bf16.msra.mxu0 %v2157
        %2217 = vmatprep.subr.bf16.mxu0 0
        %2218 = vmatpush2.bf16.msra.mxu0 %v2156
        %2219 = vmatprep.subr.bf16.mxu0 0
        %2220 = vmatpush2.bf16.msra.mxu0 %v2155
        %2221 = vmatprep.subr.bf16.mxu0 0
        %2222 = vmatpush2.bf16.msra.mxu0 %v2154
        %2223 = vmatprep.subr.bf16.mxu0 0
        %2224 = vmatpush2.bf16.msra.mxu0 %v2153
        %2225 = vmatprep.mubr.bf16.mxu0 %v2002
        %2226 = vmatmul.mubr.bf16.gmra.mxu0 %v2001
        %v2227 = vpop.f32.mrf.mxu0
        %v2228 = vadd.f32 %v1859, %v2227
        %v2229 = vpop.f32.mrf.mxu0
        %v2230 = vpop.f32.mrf.mxu0
        %v2231 = vadd.f32 %v1862, %v2230
        %v2232 = vpop.f32.mrf.mxu0
        %2233 = vmatprep.mubr.bf16.mxu0 %v2005
        %2234 = vmatmul.mubr.bf16.gmra.mxu0 %v2004
        %v2235 = vpop.f32.mrf.mxu0
        %v2236 = vadd.f32 %v1867, %v2235
        %v2237 = vpop.f32.mrf.mxu0
        %v2238 = vpop.f32.mrf.mxu0
        %v2239 = vadd.f32 %v1870, %v2238
        %v2240 = vpop.f32.mrf.mxu0
        %2241 = vmatprep.mubr.bf16.mxu0 %v2008
        %2242 = vmatmul.mubr.bf16.gmra.mxu0 %v2007
        %v2243 = vpop.f32.mrf.mxu0
        %v2244 = vadd.f32 %v1875, %v2243
        %v2245 = vpop.f32.mrf.mxu0
        %v2246 = vpop.f32.mrf.mxu0
        %v2247 = vadd.f32 %v1878, %v2246
        %v2248 = vpop.f32.mrf.mxu0
        %2249 = vmatprep.mubr.bf16.mxu0 %v2011
        %2250 = vmatmul.mubr.bf16.gmra.mxu0 %v2010
        %v2251 = vpop.f32.mrf.mxu0
        %v2252 = vadd.f32 %v1883, %v2251
        %v2253 = vpop.f32.mrf.mxu0
        %v2254 = vpop.f32.mrf.mxu0
        %v2255 = vadd.f32 %v1886, %v2254
        %v2256 = vpop.f32.mrf.mxu0
        %2257 = vmatprep.mubr.bf16.mxu0 %v2014
        %2258 = vmatmul.mubr.bf16.gmra.mxu0 %v2013
        %v2259 = vpop.f32.mrf.mxu0
        %v2260 = vadd.f32 %v1891, %v2259
        %v2261 = vpop.f32.mrf.mxu0
        %v2262 = vpop.f32.mrf.mxu0
        %v2263 = vadd.f32 %v1894, %v2262
        %v2264 = vpop.f32.mrf.mxu0
        %2265 = vmatprep.mubr.bf16.mxu0 %v2017
        %2266 = vmatmul.mubr.bf16.gmra.mxu0 %v2016
        %v2267 = vpop.f32.mrf.mxu0
        %v2268 = vadd.f32 %v1899, %v2267
        %v2269 = vpop.f32.mrf.mxu0
        %v2270 = vpop.f32.mrf.mxu0
        %v2271 = vadd.f32 %v1902, %v2270
        %v2272 = vpop.f32.mrf.mxu0
        %2273 = vmatprep.mubr.bf16.mxu0 %v2020
        %2274 = vmatmul.mubr.bf16.gmra.mxu0 %v2019
        %v2275 = vpop.f32.mrf.mxu0
        %v2276 = vadd.f32 %v1907, %v2275
        %v2277 = vpop.f32.mrf.mxu0
        %v2278 = vpop.f32.mrf.mxu0
        %v2279 = vadd.f32 %v1910, %v2278
        %v2280 = vpop.f32.mrf.mxu0
        %2281 = vmatprep.mubr.bf16.mxu0 %v2023
        %2282 = vmatmul.mubr.bf16.gmra.mxu0 %v2022
        %v2283 = vpop.f32.mrf.mxu0
        %v2284 = vadd.f32 %v1915, %v2283
        %v2285 = vpop.f32.mrf.mxu0
        %v2286 = vpop.f32.mrf.mxu0
        %v2287 = vadd.f32 %v1918, %v2286
        %v2288 = vpop.f32.mrf.mxu0
        %2289 = vdwg.mxu0
        %2290 = vmatprep.subr.bf16.mxu0 0
        %2291 = vmatpush1.bf16.msra.mxu0 %v2168
        %2292 = vmatprep.subr.bf16.mxu0 0
        %2293 = vmatpush1.bf16.msra.mxu0 %v2167
        %2294 = vmatprep.subr.bf16.mxu0 0
        %2295 = vmatpush1.bf16.msra.mxu0 %v2166
        %2296 = vmatprep.subr.bf16.mxu0 0
        %2297 = vmatpush1.bf16.msra.mxu0 %v2165
        %2298 = vmatprep.subr.bf16.mxu0 0
        %2299 = vmatpush1.bf16.msra.mxu0 %v2164
        %2300 = vmatprep.subr.bf16.mxu0 0
        %2301 = vmatpush1.bf16.msra.mxu0 %v2163
        %2302 = vmatprep.subr.bf16.mxu0 0
        %2303 = vmatpush1.bf16.msra.mxu0 %v2162
        %2304 = vmatprep.subr.bf16.mxu0 0
        %2305 = vmatpush1.bf16.msra.mxu0 %v2161
        %2306 = vmatprep.subr.bf16.mxu0 0
        %2307 = vmatpush2.bf16.msra.mxu0 0
        %2308 = vmatprep.subr.bf16.mxu0 0
        %2309 = vmatpush2.bf16.msra.mxu0 0
        %2310 = vmatprep.subr.bf16.mxu0 0
        %2311 = vmatpush2.bf16.msra.mxu0 0
        %2312 = vmatprep.subr.bf16.mxu0 0
        %2313 = vmatpush2.bf16.msra.mxu0 0
        %2314 = vmatprep.subr.bf16.mxu0 0
        %2315 = vmatpush2.bf16.msra.mxu0 0
        %2316 = vmatprep.subr.bf16.mxu0 0
        %2317 = vmatpush2.bf16.msra.mxu0 0
        %2318 = vmatprep.subr.bf16.mxu0 0
        %2319 = vmatpush2.bf16.msra.mxu0 0
        %2320 = vmatprep.subr.bf16.mxu0 0
        %2321 = vmatpush2.bf16.msra.mxu0 0
        %2322 = vmatprep.mubr.bf16.mxu0 0
        %2323 = vmatmul.mubr.bf16.gmra.mxu0 %v2003
        %v2324 = vpop.f32.mrf.mxu0
        %v2325 = vadd.f32 %v2228, %v2324
        %v2326 = vpop.f32.mrf.mxu0
        %v2327 = vpop.f32.mrf.mxu0
        %v2328 = vadd.f32 %v2231, %v2327
        %v2329 = vpop.f32.mrf.mxu0
        %2330 = vmatprep.mubr.bf16.mxu0 0
        %2331 = vmatmul.mubr.bf16.gmra.mxu0 %v2006
        %v2332 = vpop.f32.mrf.mxu0
        %v2333 = vadd.f32 %v2236, %v2332
        %v2334 = vpop.f32.mrf.mxu0
        %v2335 = vpop.f32.mrf.mxu0
        %v2336 = vadd.f32 %v2239, %v2335
        %v2337 = vpop.f32.mrf.mxu0
        %2338 = vmatprep.mubr.bf16.mxu0 0
        %2339 = vmatmul.mubr.bf16.gmra.mxu0 %v2009
        %v2340 = vpop.f32.mrf.mxu0
        %v2341 = vadd.f32 %v2244, %v2340
        %v2342 = vpop.f32.mrf.mxu0
        %v2343 = vpop.f32.mrf.mxu0
        %v2344 = vadd.f32 %v2247, %v2343
        %v2345 = vpop.f32.mrf.mxu0
        %2346 = vmatprep.mubr.bf16.mxu0 0
        %2347 = vmatmul.mubr.bf16.gmra.mxu0 %v2012
        %v2348 = vpop.f32.mrf.mxu0
        %v2349 = vadd.f32 %v2252, %v2348
        %v2350 = vpop.f32.mrf.mxu0
        %v2351 = vpop.f32.mrf.mxu0
        %v2352 = vadd.f32 %v2255, %v2351
        %v2353 = vpop.f32.mrf.mxu0
        %2354 = vmatprep.mubr.bf16.mxu0 0
        %2355 = vmatmul.mubr.bf16.gmra.mxu0 %v2015
        %v2356 = vpop.f32.mrf.mxu0
        %v2357 = vadd.f32 %v2260, %v2356
        %v2358 = vpop.f32.mrf.mxu0
        %v2359 = vpop.f32.mrf.mxu0
        %v2360 = vadd.f32 %v2263, %v2359
        %v2361 = vpop.f32.mrf.mxu0
        %2362 = vmatprep.mubr.bf16.mxu0 0
        %2363 = vmatmul.mubr.bf16.gmra.mxu0 %v2018
        %v2364 = vpop.f32.mrf.mxu0
        %v2365 = vadd.f32 %v2268, %v2364
        %v2366 = vpop.f32.mrf.mxu0
        %v2367 = vpop.f32.mrf.mxu0
        %v2368 = vadd.f32 %v2271, %v2367
        %v2369 = vpop.f32.mrf.mxu0
        %2370 = vmatprep.mubr.bf16.mxu0 0
        %2371 = vmatmul.mubr.bf16.gmra.mxu0 %v2021
        %v2372 = vpop.f32.mrf.mxu0
        %v2373 = vadd.f32 %v2276, %v2372
        %v2374 = vpop.f32.mrf.mxu0
        %v2375 = vpop.f32.mrf.mxu0
        %v2376 = vadd.f32 %v2279, %v2375
        %v2377 = vpop.f32.mrf.mxu0
        %2378 = vmatprep.mubr.bf16.mxu0 0
        %2379 = vmatmul.mubr.bf16.gmra.mxu0 %v2024
        %v2380 = vpop.f32.mrf.mxu0
        %v2381 = vadd.f32 %v2284, %v2380
        %v2382 = vpop.f32.mrf.mxu0
        %v2383 = vpop.f32.mrf.mxu0
        %v2384 = vadd.f32 %v2287, %v2383
        %v2385 = vpop.f32.mrf.mxu0
        %2386 = vdwg.mxu0
        %s2387 = scalar_lea.vmem [#allocation2], 48
        %v2388 = vld [vmem:[%s2387] sm:$0xff]
        %v2389 = vld [vmem:[%s2387 + $0x8] sm:$0xf]
        %v2390 = vld [vmem:[%s2387 + $0xc] sm:$0xff]
        %v2391 = vld [vmem:[%s2387 + $0x14] sm:$0xf]
        %v2392 = vld [vmem:[%s2387 + $0x18] sm:$0xff]
        %v2393 = vld [vmem:[%s2387 + $0x20] sm:$0xf]
        %v2394 = vld [vmem:[%s2387 + $0x24] sm:$0xff]
        %v2395 = vld [vmem:[%s2387 + $0x2c] sm:$0xf]
        %v2396 = vld [vmem:[%s2387 + $0x30] sm:$0xff]
        %v2397 = vld [vmem:[%s2387 + $0x38] sm:$0xf]
        %v2398 = vld [vmem:[%s2387 + $0x3c] sm:$0xff]
        %v2399 = vld [vmem:[%s2387 + $0x44] sm:$0xf]
        %v2400 = vld [vmem:[%s2387 + $0x48] sm:$0xff]
        %v2401 = vld [vmem:[%s2387 + $0x50] sm:$0xf]
        %v2402 = vld [vmem:[%s2387 + $0x54] sm:$0xff]
        %v2403 = vld [vmem:[%s2387 + $0x5c] sm:$0xf]
        %v2404 = vld [vmem:[%s2387 + $0x60] sm:$0xff]
        %v2405 = vld [vmem:[%s2387 + $0x68] sm:$0xf]
        %v2406 = vld [vmem:[%s2387 + $0x6c] sm:$0xff]
        %v2407 = vld [vmem:[%s2387 + $0x74] sm:$0xf]
        %v2408 = vld [vmem:[%s2387 + $0x78] sm:$0xff]
        %v2409 = vld [vmem:[%s2387 + $0x80] sm:$0xf]
        %v2410 = vld [vmem:[%s2387 + $0x84] sm:$0xff]
        %v2411 = vld [vmem:[%s2387 + $0x8c] sm:$0xf]
        %v2412 = vld [vmem:[%s2387 + $0x90] sm:$0xff]
        %v2413 = vld [vmem:[%s2387 + $0x98] sm:$0xf]
        %v2414 = vld [vmem:[%s2387 + $0x9c] sm:$0xff]
        %v2415 = vld [vmem:[%s2387 + $0xa4] sm:$0xf]
        %v2416 = vld [vmem:[%s2387 + $0xa8] sm:$0xff]
        %v2417 = vld [vmem:[%s2387 + $0xb0] sm:$0xf]
        %v2418 = vld [vmem:[%s2387 + $0xb4] sm:$0xff]
        %v2419 = vld [vmem:[%s2387 + $0xbc] sm:$0xf]
        %s2420 = scalar_lea.vmem %s6, 384
        %v2421 = vld [vmem:[%s2420] sm:$0xf]
        %v2422 = vld [vmem:[%s2420 + $0x4] sm:$0xf]
        %v2423 = vld [vmem:[%s2420 + $0x8] sm:$0xf]
        %v2424 = vld [vmem:[%s2420 + $0xc] sm:$0xf]
        %v2425 = vld [vmem:[%s2420 + $0x10] sm:$0xf]
        %v2426 = vld [vmem:[%s2420 + $0x14] sm:$0xf]
        %v2427 = vld [vmem:[%s2420 + $0x18] sm:$0xf]
        %v2428 = vld [vmem:[%s2420 + $0x1c] sm:$0xf]
        %v2429 = vld [vmem:[%s2420 + $0x20] sm:$0xf]
        %v2430 = vld [vmem:[%s2420 + $0x24] sm:$0xf]
        %v2431 = vld [vmem:[%s2420 + $0x28] sm:$0xf]
        %v2432 = vld [vmem:[%s2420 + $0x2c] sm:$0xf]
        %v2433 = vld [vmem:[%s2420 + $0x30] sm:$0xf]
        %v2434 = vld [vmem:[%s2420 + $0x34] sm:$0xf]
        %v2435 = vld [vmem:[%s2420 + $0x38] sm:$0xf]
        %v2436 = vld [vmem:[%s2420 + $0x3c] sm:$0xf]
        %v2437 = vld [vmem:[%s2420 + $0x40] sm:$0xf]
        %v2438 = vld [vmem:[%s2420 + $0x44] sm:$0xf]
        %v2439 = vld [vmem:[%s2420 + $0x48] sm:$0xf]
        %v2440 = vld [vmem:[%s2420 + $0x4c] sm:$0xf]
        %v2441 = vld [vmem:[%s2420 + $0x50] sm:$0xf]
        %v2442 = vld [vmem:[%s2420 + $0x54] sm:$0xf]
        %v2443 = vld [vmem:[%s2420 + $0x58] sm:$0xf]
        %v2444 = vld [vmem:[%s2420 + $0x5c] sm:$0xf]
        %v2445 = vld [vmem:[%s2420 + $0x60] sm:$0xf]
        %v2446 = vld [vmem:[%s2420 + $0x64] sm:$0xf]
        %v2447 = vld [vmem:[%s2420 + $0x68] sm:$0xf]
        %v2448 = vld [vmem:[%s2420 + $0x6c] sm:$0xf]
        %v2449 = vld [vmem:[%s2420 + $0x70] sm:$0xf]
        %v2450 = vld [vmem:[%s2420 + $0x74] sm:$0xf]
        %v2451 = vld [vmem:[%s2420 + $0x78] sm:$0xf]
        %v2452 = vld [vmem:[%s2420 + $0x7c] sm:$0xf]
        %v2453 = vld [vmem:[%s2420 + $0x80] sm:$0xf]
        %v2454 = vld [vmem:[%s2420 + $0x84] sm:$0xf]
        %v2455 = vld [vmem:[%s2420 + $0x88] sm:$0xf]
        %v2456 = vld [vmem:[%s2420 + $0x8c] sm:$0xf]
        %v2457 = vld [vmem:[%s2420 + $0x90] sm:$0xf]
        %v2458 = vld [vmem:[%s2420 + $0x94] sm:$0xf]
        %v2459 = vld [vmem:[%s2420 + $0x98] sm:$0xf]
        %v2460 = vld [vmem:[%s2420 + $0x9c] sm:$0xf]
        %v2461 = vld [vmem:[%s2420 + $0xa0] sm:$0xf]
        %v2462 = vld [vmem:[%s2420 + $0xa4] sm:$0xf]
        %v2463 = vld [vmem:[%s2420 + $0xa8] sm:$0xf]
        %v2464 = vld [vmem:[%s2420 + $0xac] sm:$0xf]
        %v2465 = vld [vmem:[%s2420 + $0xb0] sm:$0xf]
        %v2466 = vld [vmem:[%s2420 + $0xb4] sm:$0xf]
        %v2467 = vld [vmem:[%s2420 + $0xb8] sm:$0xf]
        %v2468 = vld [vmem:[%s2420 + $0xbc] sm:$0xf]
        %v2501 = vunpack.c.l.b16 %v2388
        %v2502 = vunpack.c.h.b16 %v2388
        %v2503 = vunpack.c.l.b16 %v2389
        %v2504 = vunpack.c.l.b16 %v2390
        %v2505 = vunpack.c.h.b16 %v2390
        %v2506 = vunpack.c.l.b16 %v2391
        %v2507 = vunpack.c.l.b16 %v2392
        %v2508 = vunpack.c.h.b16 %v2392
        %v2509 = vunpack.c.l.b16 %v2393
        %v2510 = vunpack.c.l.b16 %v2394
        %v2511 = vunpack.c.h.b16 %v2394
        %v2512 = vunpack.c.l.b16 %v2395
        %v2513 = vunpack.c.l.b16 %v2396
        %v2514 = vunpack.c.h.b16 %v2396
        %v2515 = vunpack.c.l.b16 %v2397
        %v2516 = vunpack.c.l.b16 %v2398
        %v2517 = vunpack.c.h.b16 %v2398
        %v2518 = vunpack.c.l.b16 %v2399
        %v2519 = vunpack.c.l.b16 %v2400
        %v2520 = vunpack.c.h.b16 %v2400
        %v2521 = vunpack.c.l.b16 %v2401
        %v2522 = vunpack.c.l.b16 %v2402
        %v2523 = vunpack.c.h.b16 %v2402
        %v2524 = vunpack.c.l.b16 %v2403
        %v2525 = vunpack.c.l.b16 %v2404
        %v2526 = vunpack.c.h.b16 %v2404
        %v2527 = vunpack.c.l.b16 %v2405
        %v2528 = vunpack.c.l.b16 %v2406
        %v2529 = vunpack.c.h.b16 %v2406
        %v2530 = vunpack.c.l.b16 %v2407
        %v2531 = vunpack.c.l.b16 %v2408
        %v2532 = vunpack.c.h.b16 %v2408
        %v2533 = vunpack.c.l.b16 %v2409
        %v2534 = vunpack.c.l.b16 %v2410
        %v2535 = vunpack.c.h.b16 %v2410
        %v2536 = vunpack.c.l.b16 %v2411
        %v2537 = vunpack.c.l.b16 %v2412
        %v2538 = vunpack.c.h.b16 %v2412
        %v2539 = vunpack.c.l.b16 %v2413
        %v2540 = vunpack.c.l.b16 %v2414
        %v2541 = vunpack.c.h.b16 %v2414
        %v2542 = vunpack.c.l.b16 %v2415
        %v2543 = vunpack.c.l.b16 %v2416
        %v2544 = vunpack.c.h.b16 %v2416
        %v2545 = vunpack.c.l.b16 %v2417
        %v2546 = vunpack.c.l.b16 %v2418
        %v2547 = vunpack.c.h.b16 %v2418
        %v2548 = vunpack.c.l.b16 %v2419
        %v2549 = vpack.c.b16 %v2504, %v2501
        %v2550 = vpack.c.b16 %v2505, %v2502
        %v2551 = vpack.c.b16 %v2506, %v2503
        %v2552 = vpack.c.b16 %v2510, %v2507
        %v2553 = vpack.c.b16 %v2511, %v2508
        %v2554 = vpack.c.b16 %v2512, %v2509
        %v2555 = vpack.c.b16 %v2516, %v2513
        %v2556 = vpack.c.b16 %v2517, %v2514
        %v2557 = vpack.c.b16 %v2518, %v2515
        %v2558 = vpack.c.b16 %v2522, %v2519
        %v2559 = vpack.c.b16 %v2523, %v2520
        %v2560 = vpack.c.b16 %v2524, %v2521
        %v2561 = vpack.c.b16 %v2528, %v2525
        %v2562 = vpack.c.b16 %v2529, %v2526
        %v2563 = vpack.c.b16 %v2530, %v2527
        %v2564 = vpack.c.b16 %v2534, %v2531
        %v2565 = vpack.c.b16 %v2535, %v2532
        %v2566 = vpack.c.b16 %v2536, %v2533
        %v2567 = vpack.c.b16 %v2540, %v2537
        %v2568 = vpack.c.b16 %v2541, %v2538
        %v2569 = vpack.c.b16 %v2542, %v2539
        %v2570 = vpack.c.b16 %v2546, %v2543
        %v2571 = vpack.c.b16 %v2547, %v2544
        %v2572 = vpack.c.b16 %v2548, %v2545
        %v2645 = vunpack.c.l.b16 %v2421
        %v2646 = vunpack.c.l.b16 %v2422
        %v2647 = vunpack.c.l.b16 %v2423
        %v2648 = vunpack.c.l.b16 %v2424
        %v2649 = vunpack.c.l.b16 %v2425
        %v2650 = vunpack.c.l.b16 %v2426
        %v2651 = vunpack.c.l.b16 %v2427
        %v2652 = vunpack.c.l.b16 %v2428
        %v2653 = vunpack.c.l.b16 %v2429
        %v2654 = vunpack.c.l.b16 %v2430
        %v2655 = vunpack.c.l.b16 %v2431
        %v2656 = vunpack.c.l.b16 %v2432
        %v2657 = vunpack.c.l.b16 %v2433
        %v2658 = vunpack.c.l.b16 %v2434
        %v2659 = vunpack.c.l.b16 %v2435
        %v2660 = vunpack.c.l.b16 %v2436
        %v2661 = vunpack.c.l.b16 %v2437
        %v2662 = vunpack.c.l.b16 %v2438
        %v2663 = vunpack.c.l.b16 %v2439
        %v2664 = vunpack.c.l.b16 %v2440
        %v2665 = vunpack.c.l.b16 %v2441
        %v2666 = vunpack.c.l.b16 %v2442
        %v2667 = vunpack.c.l.b16 %v2443
        %v2668 = vunpack.c.l.b16 %v2444
        %v2669 = vunpack.c.l.b16 %v2445
        %v2670 = vunpack.c.l.b16 %v2446
        %v2671 = vunpack.c.l.b16 %v2447
        %v2672 = vunpack.c.l.b16 %v2448
        %v2673 = vunpack.c.l.b16 %v2449
        %v2674 = vunpack.c.l.b16 %v2450
        %v2675 = vunpack.c.l.b16 %v2451
        %v2676 = vunpack.c.l.b16 %v2452
        %v2677 = vunpack.c.l.b16 %v2453
        %v2678 = vunpack.c.l.b16 %v2454
        %v2679 = vunpack.c.l.b16 %v2455
        %v2680 = vunpack.c.l.b16 %v2456
        %v2681 = vunpack.c.l.b16 %v2457
        %v2682 = vunpack.c.l.b16 %v2458
        %v2683 = vunpack.c.l.b16 %v2459
        %v2684 = vunpack.c.l.b16 %v2460
        %v2685 = vunpack.c.l.b16 %v2461
        %v2686 = vunpack.c.l.b16 %v2462
        %v2687 = vunpack.c.l.b16 %v2463
        %v2688 = vunpack.c.l.b16 %v2464
        %v2689 = vunpack.c.l.b16 %v2465
        %v2690 = vunpack.c.l.b16 %v2466
        %v2691 = vunpack.c.l.b16 %v2467
        %v2692 = vunpack.c.l.b16 %v2468
        %v2693 = vpack.c.b16 %v2646, %v2645
        %v2694 = vpack.c.b16 %v2648, %v2647
        %v2695 = vpack.c.b16 %v2650, %v2649
        %v2696 = vpack.c.b16 %v2652, %v2651
        %v2697 = vpack.c.b16 %v2654, %v2653
        %v2698 = vpack.c.b16 %v2656, %v2655
        %v2699 = vpack.c.b16 %v2658, %v2657
        %v2700 = vpack.c.b16 %v2660, %v2659
        %v2701 = vpack.c.b16 %v2662, %v2661
        %v2702 = vpack.c.b16 %v2664, %v2663
        %v2703 = vpack.c.b16 %v2666, %v2665
        %v2704 = vpack.c.b16 %v2668, %v2667
        %v2705 = vpack.c.b16 %v2670, %v2669
        %v2706 = vpack.c.b16 %v2672, %v2671
        %v2707 = vpack.c.b16 %v2674, %v2673
        %v2708 = vpack.c.b16 %v2676, %v2675
        %v2709 = vpack.c.b16 %v2678, %v2677
        %v2710 = vpack.c.b16 %v2680, %v2679
        %v2711 = vpack.c.b16 %v2682, %v2681
        %v2712 = vpack.c.b16 %v2684, %v2683
        %v2713 = vpack.c.b16 %v2686, %v2685
        %v2714 = vpack.c.b16 %v2688, %v2687
        %v2715 = vpack.c.b16 %v2690, %v2689
        %v2716 = vpack.c.b16 %v2692, %v2691
        %2741 = vmatprep.subr.bf16.mxu0 0
        %2742 = vmatpush1.bf16.msra.mxu0 %v2700
        %2743 = vmatprep.subr.bf16.mxu0 0
        %2744 = vmatpush1.bf16.msra.mxu0 %v2699
        %2745 = vmatprep.subr.bf16.mxu0 0
        %2746 = vmatpush1.bf16.msra.mxu0 %v2698
        %2747 = vmatprep.subr.bf16.mxu0 0
        %2748 = vmatpush1.bf16.msra.mxu0 %v2697
        %2749 = vmatprep.subr.bf16.mxu0 0
        %2750 = vmatpush1.bf16.msra.mxu0 %v2696
        %2751 = vmatprep.subr.bf16.mxu0 0
        %2752 = vmatpush1.bf16.msra.mxu0 %v2695
        %2753 = vmatprep.subr.bf16.mxu0 0
        %2754 = vmatpush1.bf16.msra.mxu0 %v2694
        %2755 = vmatprep.subr.bf16.mxu0 0
        %2756 = vmatpush1.bf16.msra.mxu0 %v2693
        %2757 = vmatprep.subr.bf16.mxu0 0
        %2758 = vmatpush2.bf16.msra.mxu0 %v2708
        %2759 = vmatprep.subr.bf16.mxu0 0
        %2760 = vmatpush2.bf16.msra.mxu0 %v2707
        %2761 = vmatprep.subr.bf16.mxu0 0
        %2762 = vmatpush2.bf16.msra.mxu0 %v2706
        %2763 = vmatprep.subr.bf16.mxu0 0
        %2764 = vmatpush2.bf16.msra.mxu0 %v2705
        %2765 = vmatprep.subr.bf16.mxu0 0
        %2766 = vmatpush2.bf16.msra.mxu0 %v2704
        %2767 = vmatprep.subr.bf16.mxu0 0
        %2768 = vmatpush2.bf16.msra.mxu0 %v2703
        %2769 = vmatprep.subr.bf16.mxu0 0
        %2770 = vmatpush2.bf16.msra.mxu0 %v2702
        %2771 = vmatprep.subr.bf16.mxu0 0
        %2772 = vmatpush2.bf16.msra.mxu0 %v2701
        %2773 = vmatprep.mubr.bf16.mxu0 %v2550
        %2774 = vmatmul.mubr.bf16.gmra.mxu0 %v2549
        %v2775 = vpop.f32.mrf.mxu0
        %v2776 = vadd.f32 0.0, %v2775
        %v2777 = vpop.f32.mrf.mxu0
        %v2778 = vpop.f32.mrf.mxu0
        %v2779 = vadd.f32 0.0, %v2778
        %v2780 = vpop.f32.mrf.mxu0
        %2781 = vmatprep.mubr.bf16.mxu0 %v2553
        %2782 = vmatmul.mubr.bf16.gmra.mxu0 %v2552
        %v2783 = vpop.f32.mrf.mxu0
        %v2784 = vadd.f32 0.0, %v2783
        %v2785 = vpop.f32.mrf.mxu0
        %v2786 = vpop.f32.mrf.mxu0
        %v2787 = vadd.f32 0.0, %v2786
        %v2788 = vpop.f32.mrf.mxu0
        %2789 = vmatprep.mubr.bf16.mxu0 %v2556
        %2790 = vmatmul.mubr.bf16.gmra.mxu0 %v2555
        %v2791 = vpop.f32.mrf.mxu0
        %v2792 = vadd.f32 0.0, %v2791
        %v2793 = vpop.f32.mrf.mxu0
        %v2794 = vpop.f32.mrf.mxu0
        %v2795 = vadd.f32 0.0, %v2794
        %v2796 = vpop.f32.mrf.mxu0
        %2797 = vmatprep.mubr.bf16.mxu0 %v2559
        %2798 = vmatmul.mubr.bf16.gmra.mxu0 %v2558
        %v2799 = vpop.f32.mrf.mxu0
        %v2800 = vadd.f32 0.0, %v2799
        %v2801 = vpop.f32.mrf.mxu0
        %v2802 = vpop.f32.mrf.mxu0
        %v2803 = vadd.f32 0.0, %v2802
        %v2804 = vpop.f32.mrf.mxu0
        %2805 = vmatprep.mubr.bf16.mxu0 %v2562
        %2806 = vmatmul.mubr.bf16.gmra.mxu0 %v2561
        %v2807 = vpop.f32.mrf.mxu0
        %v2808 = vadd.f32 0.0, %v2807
        %v2809 = vpop.f32.mrf.mxu0
        %v2810 = vpop.f32.mrf.mxu0
        %v2811 = vadd.f32 0.0, %v2810
        %v2812 = vpop.f32.mrf.mxu0
        %2813 = vmatprep.mubr.bf16.mxu0 %v2565
        %2814 = vmatmul.mubr.bf16.gmra.mxu0 %v2564
        %v2815 = vpop.f32.mrf.mxu0
        %v2816 = vadd.f32 0.0, %v2815
        %v2817 = vpop.f32.mrf.mxu0
        %v2818 = vpop.f32.mrf.mxu0
        %v2819 = vadd.f32 0.0, %v2818
        %v2820 = vpop.f32.mrf.mxu0
        %2821 = vmatprep.mubr.bf16.mxu0 %v2568
        %2822 = vmatmul.mubr.bf16.gmra.mxu0 %v2567
        %v2823 = vpop.f32.mrf.mxu0
        %v2824 = vadd.f32 0.0, %v2823
        %v2825 = vpop.f32.mrf.mxu0
        %v2826 = vpop.f32.mrf.mxu0
        %v2827 = vadd.f32 0.0, %v2826
        %v2828 = vpop.f32.mrf.mxu0
        %2829 = vmatprep.mubr.bf16.mxu0 %v2571
        %2830 = vmatmul.mubr.bf16.gmra.mxu0 %v2570
        %v2831 = vpop.f32.mrf.mxu0
        %v2832 = vadd.f32 0.0, %v2831
        %v2833 = vpop.f32.mrf.mxu0
        %v2834 = vpop.f32.mrf.mxu0
        %v2835 = vadd.f32 0.0, %v2834
        %v2836 = vpop.f32.mrf.mxu0
        %2837 = vdwg.mxu0
        %2838 = vmatprep.subr.bf16.mxu0 0
        %2839 = vmatpush1.bf16.msra.mxu0 %v2716
        %2840 = vmatprep.subr.bf16.mxu0 0
        %2841 = vmatpush1.bf16.msra.mxu0 %v2715
        %2842 = vmatprep.subr.bf16.mxu0 0
        %2843 = vmatpush1.bf16.msra.mxu0 %v2714
        %2844 = vmatprep.subr.bf16.mxu0 0
        %2845 = vmatpush1.bf16.msra.mxu0 %v2713
        %2846 = vmatprep.subr.bf16.mxu0 0
        %2847 = vmatpush1.bf16.msra.mxu0 %v2712
        %2848 = vmatprep.subr.bf16.mxu0 0
        %2849 = vmatpush1.bf16.msra.mxu0 %v2711
        %2850 = vmatprep.subr.bf16.mxu0 0
        %2851 = vmatpush1.bf16.msra.mxu0 %v2710
        %2852 = vmatprep.subr.bf16.mxu0 0
        %2853 = vmatpush1.bf16.msra.mxu0 %v2709
        %2854 = vmatprep.subr.bf16.mxu0 0
        %2855 = vmatpush2.bf16.msra.mxu0 0
        %2856 = vmatprep.subr.bf16.mxu0 0
        %2857 = vmatpush2.bf16.msra.mxu0 0
        %2858 = vmatprep.subr.bf16.mxu0 0
        %2859 = vmatpush2.bf16.msra.mxu0 0
        %2860 = vmatprep.subr.bf16.mxu0 0
        %2861 = vmatpush2.bf16.msra.mxu0 0
        %2862 = vmatprep.subr.bf16.mxu0 0
        %2863 = vmatpush2.bf16.msra.mxu0 0
        %2864 = vmatprep.subr.bf16.mxu0 0
        %2865 = vmatpush2.bf16.msra.mxu0 0
        %2866 = vmatprep.subr.bf16.mxu0 0
        %2867 = vmatpush2.bf16.msra.mxu0 0
        %2868 = vmatprep.subr.bf16.mxu0 0
        %2869 = vmatpush2.bf16.msra.mxu0 0
        %2870 = vmatprep.mubr.bf16.mxu0 0
        %2871 = vmatmul.mubr.bf16.gmra.mxu0 %v2551
        %v2872 = vpop.f32.mrf.mxu0
        %v2873 = vadd.f32 %v2776, %v2872
        %v2874 = vpop.f32.mrf.mxu0
        %v2875 = vpop.f32.mrf.mxu0
        %v2876 = vadd.f32 %v2779, %v2875
        %v2877 = vpop.f32.mrf.mxu0
        %2878 = vmatprep.mubr.bf16.mxu0 0
        %2879 = vmatmul.mubr.bf16.gmra.mxu0 %v2554
        %v2880 = vpop.f32.mrf.mxu0
        %v2881 = vadd.f32 %v2784, %v2880
        %v2882 = vpop.f32.mrf.mxu0
        %v2883 = vpop.f32.mrf.mxu0
        %v2884 = vadd.f32 %v2787, %v2883
        %v2885 = vpop.f32.mrf.mxu0
        %2886 = vmatprep.mubr.bf16.mxu0 0
        %2887 = vmatmul.mubr.bf16.gmra.mxu0 %v2557
        %v2888 = vpop.f32.mrf.mxu0
        %v2889 = vadd.f32 %v2792, %v2888
        %v2890 = vpop.f32.mrf.mxu0
        %v2891 = vpop.f32.mrf.mxu0
        %v2892 = vadd.f32 %v2795, %v2891
        %v2893 = vpop.f32.mrf.mxu0
        %2894 = vmatprep.mubr.bf16.mxu0 0
        %2895 = vmatmul.mubr.bf16.gmra.mxu0 %v2560
        %v2896 = vpop.f32.mrf.mxu0
        %v2897 = vadd.f32 %v2800, %v2896
        %v2898 = vpop.f32.mrf.mxu0
        %v2899 = vpop.f32.mrf.mxu0
        %v2900 = vadd.f32 %v2803, %v2899
        %v2901 = vpop.f32.mrf.mxu0
        %2902 = vmatprep.mubr.bf16.mxu0 0
        %2903 = vmatmul.mubr.bf16.gmra.mxu0 %v2563
        %v2904 = vpop.f32.mrf.mxu0
        %v2905 = vadd.f32 %v2808, %v2904
        %v2906 = vpop.f32.mrf.mxu0
        %v2907 = vpop.f32.mrf.mxu0
        %v2908 = vadd.f32 %v2811, %v2907
        %v2909 = vpop.f32.mrf.mxu0
        %2910 = vmatprep.mubr.bf16.mxu0 0
        %2911 = vmatmul.mubr.bf16.gmra.mxu0 %v2566
        %v2912 = vpop.f32.mrf.mxu0
        %v2913 = vadd.f32 %v2816, %v2912
        %v2914 = vpop.f32.mrf.mxu0
        %v2915 = vpop.f32.mrf.mxu0
        %v2916 = vadd.f32 %v2819, %v2915
        %v2917 = vpop.f32.mrf.mxu0
        %2918 = vmatprep.mubr.bf16.mxu0 0
        %2919 = vmatmul.mubr.bf16.gmra.mxu0 %v2569
        %v2920 = vpop.f32.mrf.mxu0
        %v2921 = vadd.f32 %v2824, %v2920
        %v2922 = vpop.f32.mrf.mxu0
        %v2923 = vpop.f32.mrf.mxu0
        %v2924 = vadd.f32 %v2827, %v2923
        %v2925 = vpop.f32.mrf.mxu0
        %2926 = vmatprep.mubr.bf16.mxu0 0
        %2927 = vmatmul.mubr.bf16.gmra.mxu0 %v2572
        %v2928 = vpop.f32.mrf.mxu0
        %v2929 = vadd.f32 %v2832, %v2928
        %v2930 = vpop.f32.mrf.mxu0
        %v2931 = vpop.f32.mrf.mxu0
        %v2932 = vadd.f32 %v2835, %v2931
        %v2933 = vpop.f32.mrf.mxu0
        %2934 = vdwg.mxu0
        %v2935 = vadd.f32 %v2325, %v2873
        %v2936 = vadd.f32 %v2328, %v2876
        %v2937 = vadd.f32 %v2333, %v2881
        %v2938 = vadd.f32 %v2336, %v2884
        %v2939 = vadd.f32 %v2341, %v2889
        %v2940 = vadd.f32 %v2344, %v2892
        %v2941 = vadd.f32 %v2349, %v2897
        %v2942 = vadd.f32 %v2352, %v2900
        %v2943 = vadd.f32 %v2357, %v2905
        %v2944 = vadd.f32 %v2360, %v2908
        %v2945 = vadd.f32 %v2365, %v2913
        %v2946 = vadd.f32 %v2368, %v2916
        %v2947 = vadd.f32 %v2373, %v2921
        %v2948 = vadd.f32 %v2376, %v2924
        %v2949 = vadd.f32 %v2381, %v2929
        %v2950 = vadd.f32 %v2384, %v2932
        %2967 = vrot.lane.b32.xlu0 %v374, 32
        %v2968 = vpop.permute.xlu0 %2967
        %2969 = vrot.lane.b32.xlu0 %v375, 32
        %v2970 = vpop.permute.xlu0 %2969
        %2971 = vrot.lane.b32.xlu0 %v376, 32
        %v2972 = vpop.permute.xlu0 %2971
        %2973 = vrot.lane.b32.xlu0 %v377, 32
        %v2974 = vpop.permute.xlu0 %2973
        %2975 = vrot.lane.b32.xlu0 %v378, 32
        %v2976 = vpop.permute.xlu0 %2975
        %2977 = vrot.lane.b32.xlu0 %v379, 32
        %v2978 = vpop.permute.xlu0 %2977
        %2979 = vrot.lane.b32.xlu0 %v380, 32
        %v2980 = vpop.permute.xlu0 %2979
        %2981 = vrot.lane.b32.xlu0 %v381, 32
        %v2982 = vpop.permute.xlu0 %2981
        %2983 = vrot.lane.b32.xlu0 %v382, 32
        %v2984 = vpop.permute.xlu0 %2983
        %2985 = vrot.lane.b32.xlu0 %v383, 32
        %v2986 = vpop.permute.xlu0 %2985
        %2987 = vrot.lane.b32.xlu0 %v384, 32
        %v2988 = vpop.permute.xlu0 %2987
        %2989 = vrot.lane.b32.xlu0 %v385, 32
        %v2990 = vpop.permute.xlu0 %2989
        %2991 = vrot.lane.b32.xlu0 %v386, 32
        %v2992 = vpop.permute.xlu0 %2991
        %2993 = vrot.lane.b32.xlu0 %v387, 32
        %v2994 = vpop.permute.xlu0 %2993
        %2995 = vrot.lane.b32.xlu0 %v388, 32
        %v2996 = vpop.permute.xlu0 %2995
        %2997 = vrot.lane.b32.xlu0 %v389, 32
        %v2998 = vpop.permute.xlu0 %2997
        %vm3015 = vcmask 261120
        %v3016 = vsel %vm3015, %v2935, %v2968
        %v3017 = vsel %vm3015, %v2936, %v2970
        %v3018 = vsel %vm3015, %v2937, %v2972
        %v3019 = vsel %vm3015, %v2938, %v2974
        %v3020 = vsel %vm3015, %v2939, %v2976
        %v3021 = vsel %vm3015, %v2940, %v2978
        %v3022 = vsel %vm3015, %v2941, %v2980
        %v3023 = vsel %vm3015, %v2942, %v2982
        %v3024 = vsel %vm3015, %v2943, %v2984
        %v3025 = vsel %vm3015, %v2944, %v2986
        %v3026 = vsel %vm3015, %v2945, %v2988
        %v3027 = vsel %vm3015, %v2946, %v2990
        %v3028 = vsel %vm3015, %v2947, %v2992
        %v3029 = vsel %vm3015, %v2948, %v2994
        %v3030 = vsel %vm3015, %v2949, %v2996
        %v3031 = vsel %vm3015, %v2950, %v2998
        %vm3032 = vcmask 785408
        %3033 = vst.msk [vmem:[%s285] sm:$0xff] %vm3032, %v3016
        %3034 = vst.msk [vmem:[%s285 + $0x8] sm:$0xff] %vm3032, %v3017
        %3035 = vst.msk [vmem:[%s285 + $0x10] sm:$0xff] %vm3032, %v3018
        %3036 = vst.msk [vmem:[%s285 + $0x18] sm:$0xff] %vm3032, %v3019
        %3037 = vst.msk [vmem:[%s285 + $0x20] sm:$0xff] %vm3032, %v3020
        %3038 = vst.msk [vmem:[%s285 + $0x28] sm:$0xff] %vm3032, %v3021
        %3039 = vst.msk [vmem:[%s285 + $0x30] sm:$0xff] %vm3032, %v3022
        %3040 = vst.msk [vmem:[%s285 + $0x38] sm:$0xff] %vm3032, %v3023
        %3041 = vst.msk [vmem:[%s285 + $0x40] sm:$0xff] %vm3032, %v3024
        %3042 = vst.msk [vmem:[%s285 + $0x48] sm:$0xff] %vm3032, %v3025
        %3043 = vst.msk [vmem:[%s285 + $0x50] sm:$0xff] %vm3032, %v3026
        %3044 = vst.msk [vmem:[%s285 + $0x58] sm:$0xff] %vm3032, %v3027
        %3045 = vst.msk [vmem:[%s285 + $0x60] sm:$0xff] %vm3032, %v3028
        %3046 = vst.msk [vmem:[%s285 + $0x68] sm:$0xff] %vm3032, %v3029
        %3047 = vst.msk [vmem:[%s285 + $0x70] sm:$0xff] %vm3032, %v3030
        %3048 = vst.msk [vmem:[%s285 + $0x78] sm:$0xff] %vm3032, %v3031
        %s3049 = sand.u32 %s195, 1
        %s3050 = scalar_lea.sflag [#allocation4], %s3049
        %s3051 = sand.u32 %s195, 1
        %s3052 = smul.addr %s3051, 128
        %s3053 = scalar_lea.vmem [#allocation3], %s3052
        // Predicated region
        $region65: #{bottleneck_forward_nchw.1} parent=47 // pred_check
          %p3054 = pneg %p205
        $region66: #{bottleneck_forward_nchw.1} parent=47 // pred_check_branch
          %3056 = sbr.rel (%p3054) target = $region68
        $region67: #{bottleneck_forward_nchw.1} parent=47 // pred_region
          %s3057 = smul.u32 8, %s26
          %s3059 = ssub.s32 2048, 2048
          %3060 = vsyncadd %s3050, %s3059
          %s3061 = smul.addr %s3057, 2
          %s3062 = smul.addr %s25, 32
          %s3063 = sadd.s32 %s3061, %s3062
          %s3064 = smul.addr %s3063, 128
          %s3065 = scalar_lea.hbm %s7, %s3064
          %s3066 = sshll.u32 %s3053, 4
          %s3067 = int_to_ptr.vmem [resolvable:$true] %s3066
          %3072 = dma.vmem_to_hbm [thread:$0]  %s3067, 2048, %s3065, %s3050, 128, 128, 8
        $region68: #{bottleneck_forward_nchw.1} parent=47 // pred_fallthru
          _
      $region48: #{bottleneck_forward_nchw.1} parent=5 // pred_fallthru
        _
      %p3073 = scmp.le.s32.totalorder 2, %s16
      // Predicated region
      $region69: #{bottleneck_forward_nchw.1} parent=5 // pred_check
        %p3074 = pneg %p3073
      $region70: #{bottleneck_forward_nchw.1} parent=5 // pred_check_branch
        %3076 = sbr.rel (%p3074) target = $region72
      $region71: #{bottleneck_forward_nchw.1} parent=5 // pred_region
        %s3077 = ssub.s32 %s16, 2
        // Predicated region
        $region73: #{bottleneck_forward_nchw.1} parent=71 // pred_check
          %p3078 = pneg %p211
        $region74: #{bottleneck_forward_nchw.1} parent=71 // pred_check_branch
          %3080 = sbr.rel (%p3078) target = $region76
        $region75: #{bottleneck_forward_nchw.1} parent=71 // pred_region
          %s3081 = sand.u32 %s196, 1
          %s3082 = scalar_lea.sflag [#allocation4], %s3081
          %s3083 = sand.u32 %s196, 1
          %s3084 = smul.addr %s3083, 128
          %s3085 = scalar_lea.vmem [#allocation3], %s3084
          %3086 = dma.done %s3082, 2048
        $region76: #{bottleneck_forward_nchw.1} parent=71 // pred_fallthru
          _
      $region72: #{bottleneck_forward_nchw.1} parent=5 // pred_fallthru
        _
    $region6: #{bottleneck_forward_nchw.1} parent=1 // loop_footer
      %s20 = sadd.s32 1, %s16
    $region7: #{bottleneck_forward_nchw.1} parent=1 // loop_footer_branch
      %15 = sbr.rel target = $region3
    $region8: #{bottleneck_forward_nchw.1} parent=1 // loop_exit
      _
    %3087 = vsyncpa [#allocation4], 1
    %s3088 = scalar_lea.sflag [#allocation4], 1
    %3089 = vsyncpa %s3088, 1

</llo_original>
